<compile_context>
chip_gen: v5e
topology: v5e:2x2
jax: 0.10.0
libtpu: 0.0.40
codegen_flags: <defaults>
</compile_context>

<pallas_src>
import jax
import jax.numpy as jnp
from jax import lax
from jax.experimental import pallas as pl
from jax.experimental.pallas import tpu as pltpu

LANE = 128
SUBLANE = 8


def _round_up(x, m):
    return ((x + m - 1) // m) * m


def _pad_last(a, target):
    pad = target - a.shape[-1]
    if pad <= 0:
        return a
    return jnp.pad(a, [(0, 0)] * (a.ndim - 1) + [(0, pad)])


# ----------------------------- Fused kernel ---------------------------------
def make_gru_net_kernel(n_layers, T, BP, H, G):
    """Fused GRUNet forward.

    Ref order: x2d, (wih, bih, whh, bhh) * n_layers, fc_w, fc_b, out, xproj_scr
      x2d       : (T*BP, D)  bf16  time-major input, batch padded to BP
      wih       : (D_in, G)  bf16  fused+padded input->hidden weights (r|z|n)
      bih       : (1, G)     f32
      whh       : (H, G)     bf16  fused+padded hidden->hidden weights
      bhh       : (1, G)     f32
      fc_w      : (H, OP)    bf16  padded FC weight (transposed)
      fc_b      : (1, OP)    f32
      out       : (BP, OP)   f32   lane-dense padded output
      xproj_scr : (T*BP, G)  f32   VMEM scratch for hoisted layer-0 projection
    """
    bf16 = jnp.bfloat16

    def kernel(*refs):
        x2d_ref = refs[0]
        layer_refs = refs[1:1 + 4 * n_layers]
        fcw_ref = refs[1 + 4 * n_layers]
        fcb_ref = refs[2 + 4 * n_layers]
        out_ref = refs[3 + 4 * n_layers]
        xproj_scr = refs[4 + 4 * n_layers]

        # Hoisted layer-0 input projection: ONE bf16 matmul for all T steps,
        # staged in VMEM so only one (BP, G) tile is live per step.
        xproj_scr[...] = (
            jnp.dot(x2d_ref[...], layer_refs[0][...],
                    preferred_element_type=jnp.float32)
            + layer_refs[1][...]
        )

        # Hoist per-layer weight loads / bias broadcasts out of the t-loop.
        whhs, bhhs, wihs, bihs = [], [], [], []
        for l in range(n_layers):
            wih_ref, bih_ref, whh_ref, bhh_ref = layer_refs[4 * l:4 * l + 4]
            whhs.append(whh_ref[...])                             # (H, G) bf16
            bhhs.append(jnp.broadcast_to(bhh_ref[...], (BP, G)))  # (BP, G) f32
            if l == 0:
                wihs.append(None)   # layer 0 uses the hoisted projection
                bihs.append(None)
            else:
                wihs.append(wih_ref[...])
                bihs.append(jnp.broadcast_to(bih_ref[...], (BP, G)))

        def gru_cell(xp, hp, h_prev):
            # Gate math kept in f32 (v5e has no bf16 VPU/EUP).
            r = jax.nn.sigmoid(xp[:, 0:H] + hp[:, 0:H])
            z = jax.nn.sigmoid(xp[:, H:2 * H] + hp[:, H:2 * H])
            n = jnp.tanh(xp[:, 2 * H:3 * H] + r * hp[:, 2 * H:3 * H])
            return (1.0 - z) * n + z * h_prev

        # Layer-wavefront recurrence: each step advances every layer, so layer
        # l+1 step t is independent of layer l step t+1 -> n_layers independent
        # MXU/EUP chains in flight; no inter-layer sequence scratch needed.
        def step(t, hs):
            row = pl.multiple_of(t * BP, BP)
            new_hs = []
            inp = None
            for l in range(n_layers):
                h_prev = hs[l]
                if l == 0:
                    xp = xproj_scr[pl.ds(row, BP), :]             # (BP, G) f32
                else:
                    xp = (jnp.dot(inp.astype(bf16), wihs[l],
                                  preferred_element_type=jnp.float32)
                          + bihs[l])
                hp = (jnp.dot(h_prev.astype(bf16), whhs[l],
                              preferred_element_type=jnp.float32)
                      + bhhs[l])
                h_new = gru_cell(xp, hp, h_prev)
                new_hs.append(h_new)
                inp = h_new
            return tuple(new_hs)

        hs0 = tuple(jnp.zeros((BP, H), jnp.float32) for _ in range(n_layers))
        hs = lax.fori_loop(0, T, step, hs0, unroll=min(T, 8))
        h_last = hs[n_layers - 1]

        # Fused out[:, -1] -> ReLU -> Linear; lane-dense (BP, OP) store.
        out_ref[...] = (
            jnp.dot(jnp.maximum(h_last, 0.0).astype(bf16), fcw_ref[...],
                    preferred_element_type=jnp.float32)
            + fcb_ref[...]
        ).astype(out_ref.dtype)

    return kernel


# ----------------------------- Wrapper ---------------------------------------
def gru_net_forward(x_btd, params):
    B, T, D = x_btd.shape
    H = params["hidden_size"]
    O = params["output_size"]
    G = params["gate_pad"]
    OP = params["out_pad"]
    n_layers = len(params["layers"])
    BP = _round_up(B, SUBLANE)     # pad batch to full sublanes -> whole-vreg state

    # batch-first -> time-major, pad batch, flatten, bf16 LHS for the MXU.
    x_tbd = jnp.transpose(x_btd, (1, 0, 2)).astype(jnp.float32)
    if BP != B:
        x_tbd = jnp.pad(x_tbd, ((0, 0), (0, BP - B), (0, 0)))
    x2d = x_tbd.reshape(T * BP, D).astype(jnp.bfloat16)

    flat = [x2d]
    for (wih, bih, whh, bhh) in params["layers"]:
        flat += [wih.astype(jnp.bfloat16), bih, whh.astype(jnp.bfloat16), bhh]
    flat += [params["fc_w"].astype(jnp.bfloat16), params["fc_b"]]

    flops = (
        2 * (T * BP) * D * G                      # hoisted layer-0 projection
        + 2 * T * n_layers * BP * H * G           # per-step h @ Whh
        + 2 * T * (n_layers - 1) * BP * H * G     # per-step x-proj, layers >= 1
        + 2 * BP * H * OP                         # final FC
    )
    transcendentals = T * n_layers * BP * 3 * H
    bytes_accessed = int(sum(int(a.size) * a.dtype.itemsize for a in flat)) + BP * OP * 4

    kernel = make_gru_net_kernel(n_layers, T, BP, H, G)
    out_pad = pl.pallas_call(
        kernel,
        out_shape=jax.ShapeDtypeStruct((BP, OP), jnp.float32),
        in_specs=[pl.BlockSpec(memory_space=pltpu.MemorySpace.VMEM)] * len(flat),
        out_specs=pl.BlockSpec(memory_space=pltpu.MemorySpace.VMEM),
        scratch_shapes=[pltpu.VMEM((T * BP, G), jnp.float32)],
        compiler_params=pltpu.CompilerParams(vmem_limit_bytes=32 * 1024 * 1024),
        cost_estimate=pl.CostEstimate(flops=flops,
                                      transcendentals=transcendentals,
                                      bytes_accessed=bytes_accessed),
    )(*flat)
    return out_pad[:B, :O]


# ----------------------------- Parameter setup -------------------------------
def xavier_uniform(key, shape):
    fan_out, fan_in = shape[0], shape[1]
    bound = (6.0 / (fan_in + fan_out)) ** 0.5
    return jax.random.uniform(key, shape, jnp.float32, -bound, bound)


def init_params(key, input_size, hidden_size, output_size, n_layers):
    H = hidden_size
    G = max(LANE, _round_up(3 * H, LANE))     # fused gate dim (r|z|n), lane-padded
    OP = max(LANE, _round_up(output_size, LANE))
    k = 1.0 / (H ** 0.5)

    layers = []
    for l in range(n_layers):
        d_in = input_size if l == 0 else H
        key, k1, k2, k3, k4 = jax.random.split(key, 5)
        w_ih = xavier_uniform(k1, (3 * H, d_in))          # PyTorch (3H, D), rows r|z|n
        w_hh = xavier_uniform(k2, (3 * H, H))
        b_ih = jax.random.uniform(k3, (3 * H,), jnp.float32, -k, k)
        b_hh = jax.random.uniform(k4, (3 * H,), jnp.float32, -k, k)
        wih = _pad_last(w_ih.T, G)                        # (D, G)
        whh = _pad_last(w_hh.T, G)                        # (H, G)
        bih = _pad_last(b_ih.reshape(1, 3 * H), G)        # (1, G)
        bhh = _pad_last(b_hh.reshape(1, 3 * H), G)        # (1, G)
        layers.append((wih, bih, whh, bhh))

    key, k5, k6 = jax.random.split(key, 3)
    fc_w = xavier_uniform(k5, (output_size, H))           # PyTorch (O, H)
    fc_b = jax.random.uniform(k6, (output_size,), jnp.float32, -k, k)

    return {
        "layers": layers,
        "fc_w": _pad_last(fc_w.T, OP),                    # (H, OP)
        "fc_b": _pad_last(fc_b.reshape(1, -1), OP),       # (1, OP)
        "hidden_size": H,
        "output_size": output_size,
        "gate_pad": G,
        "out_pad": OP,
    }


# ----------------------------- Pure-JAX reference ------------------------------
# Mirrors the kernel's numerics: bf16 matmul operands, f32 accumulation,
# f32 gate math (same GRU semantics as PyTorch nn.GRU, batch_first, 2 layers).
def gru_net_reference(x_btd, params):
    H = params["hidden_size"]
    O = params["output_size"]
    B, T, _ = x_btd.shape
    bf16 = jnp.bfloat16
    cur = jnp.transpose(x_btd, (1, 0, 2)).astype(jnp.float32)   # (T, B, D)
    h = None
    for (wih, bih, whh, bhh) in params["layers"]:
        wih_b = wih[:, :3 * H].astype(bf16)
        whh_b = whh[:, :3 * H].astype(bf16)
        h = jnp.zeros((B, H), jnp.float32)
        outs = []
        for t in range(T):
            xp = jnp.dot(cur[t].astype(bf16), wih_b,
                         preferred_element_type=jnp.float32) + bih[:, :3 * H]
            hp = jnp.dot(h.astype(bf16), whh_b,
                         preferred_element_type=jnp.float32) + bhh[:, :3 * H]
            r = jax.nn.sigmoid(xp[:, :H] + hp[:, :H])
            z = jax.nn.sigmoid(xp[:, H:2 * H] + hp[:, H:2 * H])
            n = jnp.tanh(xp[:, 2 * H:] + r * hp[:, 2 * H:])
            h = (1.0 - z) * n + z * h
            outs.append(h)
        cur = jnp.stack(outs)
    return (jnp.dot(jnp.maximum(h, 0.0).astype(bf16),
                    params["fc_w"][:, :O].astype(bf16),
                    preferred_element_type=jnp.float32)
            + params["fc_b"][:, :O])


if __name__ == "__main__":
    input_size, hidden_size, output_size, n_layers = 16, 32, 8, 2
    batch, seq = 2, 8

    key = jax.random.PRNGKey(0)
    key, kx, kp = jax.random.split(key, 3)
    x = jax.random.normal(kx, (batch, seq, input_size), jnp.float32)
    params = init_params(kp, input_size, hidden_size, output_size, n_layers)

    out = jax.block_until_ready(gru_net_forward(x, params))
    ref = gru_net_reference(x, params)

    assert out.shape == (batch, output_size)
    assert jnp.allclose(out, ref, rtol=2e-3, atol=2e-3), (
        f"max abs err {jnp.max(jnp.abs(out - ref))}")
    print("KERNEL_OK")
</pallas_src>

<mosaic_0001>
module attributes {stable_mosaic.version = 11 : i64} {
  func.func @kernel(%arg0: memref<64x16xbf16, #tpu.memory_space<vmem>>, %arg1: memref<16x128xbf16, #tpu.memory_space<vmem>>, %arg2: memref<1x128xf32, #tpu.memory_space<vmem>>, %arg3: memref<32x128xbf16, #tpu.memory_space<vmem>>, %arg4: memref<1x128xf32, #tpu.memory_space<vmem>>, %arg5: memref<32x128xbf16, #tpu.memory_space<vmem>>, %arg6: memref<1x128xf32, #tpu.memory_space<vmem>>, %arg7: memref<32x128xbf16, #tpu.memory_space<vmem>>, %arg8: memref<1x128xf32, #tpu.memory_space<vmem>>, %arg9: memref<32x128xbf16, #tpu.memory_space<vmem>>, %arg10: memref<1x128xf32, #tpu.memory_space<vmem>>, %arg11: memref<8x128xf32, #tpu.memory_space<vmem>>, %arg12: memref<64x128xf32, #tpu.memory_space<vmem>>) attributes {dimension_semantics = [], scalar_prefetch = 0 : i64, scratch_operands = 1 : i64, tpu.core_type = #tpu.core_type<tc>} {
    %c0 = arith.constant 0 : index
    %c0_0 = arith.constant 0 : index
    %0 = vector.load %arg0[%c0, %c0_0] : memref<64x16xbf16, #tpu.memory_space<vmem>>, vector<64x16xbf16>
    %c0_1 = arith.constant 0 : index
    %c0_2 = arith.constant 0 : index
    %1 = vector.load %arg1[%c0_1, %c0_2] : memref<16x128xbf16, #tpu.memory_space<vmem>>, vector<16x128xbf16>
    %cst = arith.constant dense<0.000000e+00> : vector<64x128xf32>
    %2 = tpu.matmul %0, %1, %cst {dimension_numbers = #tpu.dot_dimension_numbers<[1], [0], [0], [1], [0, 0, 1, 1], [], []>} : vector<64x16xbf16>, vector<16x128xbf16>, vector<64x128xf32> -> vector<64x128xf32>
    %c0_3 = arith.constant 0 : index
    %c0_4 = arith.constant 0 : index
    %3 = vector.load %arg2[%c0_3, %c0_4] : memref<1x128xf32, #tpu.memory_space<vmem>>, vector<1x128xf32>
    %4 = vector.broadcast %3 : vector<1x128xf32> to vector<64x128xf32>
    %5 = arith.addf %2, %4 : vector<64x128xf32>
    %c0_5 = arith.constant 0 : index
    %c0_6 = arith.constant 0 : index
    %6 = vector.load %arg12[%c0_5, %c0_6] : memref<64x128xf32, #tpu.memory_space<vmem>>, vector<64x128xf32>
    tpu.vector_store %arg12[%c0_5, %c0_6], %5 {strides = array<i32>} : memref<64x128xf32, #tpu.memory_space<vmem>>, vector<64x128xf32>,
    %c0_7 = arith.constant 0 : index
    %c0_8 = arith.constant 0 : index
    %7 = vector.load %arg3[%c0_7, %c0_8] : memref<32x128xbf16, #tpu.memory_space<vmem>>, vector<32x128xbf16>
    %c0_9 = arith.constant 0 : index
    %c0_10 = arith.constant 0 : index
    %8 = vector.load %arg4[%c0_9, %c0_10] : memref<1x128xf32, #tpu.memory_space<vmem>>, vector<1x128xf32>
    %9 = vector.shape_cast %8 : vector<1x128xf32> to vector<1x128xf32>
    %10 = vector.broadcast %9 : vector<1x128xf32> to vector<8x128xf32>
    %c0_11 = arith.constant 0 : index
    %c0_12 = arith.constant 0 : index
    %11 = vector.load %arg7[%c0_11, %c0_12] : memref<32x128xbf16, #tpu.memory_space<vmem>>, vector<32x128xbf16>
    %c0_13 = arith.constant 0 : index
    %c0_14 = arith.constant 0 : index
    %12 = vector.load %arg8[%c0_13, %c0_14] : memref<1x128xf32, #tpu.memory_space<vmem>>, vector<1x128xf32>
    %13 = vector.shape_cast %12 : vector<1x128xf32> to vector<1x128xf32>
    %14 = vector.broadcast %13 : vector<1x128xf32> to vector<8x128xf32>
    %c0_15 = arith.constant 0 : index
    %c0_16 = arith.constant 0 : index
    %15 = vector.load %arg5[%c0_15, %c0_16] : memref<32x128xbf16, #tpu.memory_space<vmem>>, vector<32x128xbf16>
    %c0_17 = arith.constant 0 : index
    %c0_18 = arith.constant 0 : index
    %16 = vector.load %arg6[%c0_17, %c0_18] : memref<1x128xf32, #tpu.memory_space<vmem>>, vector<1x128xf32>
    %17 = vector.shape_cast %16 : vector<1x128xf32> to vector<1x128xf32>
    %18 = vector.broadcast %17 : vector<1x128xf32> to vector<8x128xf32>
    %cst_19 = arith.constant 0.000000e+00 : f32
    %19 = vector.broadcast %cst_19 : f32 to vector<8x32xf32>
    %cst_20 = arith.constant 0.000000e+00 : f32
    %20 = vector.broadcast %cst_20 : f32 to vector<8x32xf32>
    %c0_i32 = arith.constant 0 : i32
    %c8_i32 = arith.constant 8 : i32
    %21 = arith.muli %c0_i32, %c8_i32 : i32
    %22 = tpu.assume_multiple %21, 8 : i32
    %23 = arith.index_cast %22 : i32 to index
    %c0_21 = arith.constant 0 : index
    %24 = vector.load %arg12[%23, %c0_21] : memref<64x128xf32, #tpu.memory_space<vmem>>, vector<8x128xf32>
    %25 = arith.truncf %19 : vector<8x32xf32> to vector<8x32xbf16>
    %cst_22 = arith.constant dense<0.000000e+00> : vector<8x128xf32>
    %26 = tpu.matmul %25, %7, %cst_22 {dimension_numbers = #tpu.dot_dimension_numbers<[1], [0], [0], [1], [0, 0, 1, 1], [], []>} : vector<8x32xbf16>, vector<32x128xbf16>, vector<8x128xf32> -> vector<8x128xf32>
    %27 = arith.addf %26, %10 : vector<8x128xf32>
    %28 = vector.extract_strided_slice %24 {offsets = [0, 0], sizes = [8, 32], strides = [1, 1]} : vector<8x128xf32> to vector<8x32xf32>
    %29 = vector.extract_strided_slice %27 {offsets = [0, 0], sizes = [8, 32], strides = [1, 1]} : vector<8x128xf32> to vector<8x32xf32>
    %30 = arith.addf %28, %29 : vector<8x32xf32>
    %31 = arith.negf %30 : vector<8x32xf32>
    %32 = math.exp %31 : vector<8x32xf32>
    %cst_23 = arith.constant 1.000000e+00 : f32
    %33 = vector.broadcast %cst_23 : f32 to vector<8x32xf32>
    %34 = arith.addf %33, %32 : vector<8x32xf32>
    %35 = arith.divf %33, %34 : vector<8x32xf32>
    %36 = vector.extract_strided_slice %24 {offsets = [0, 32], sizes = [8, 32], strides = [1, 1]} : vector<8x128xf32> to vector<8x32xf32>
    %37 = vector.extract_strided_slice %27 {offsets = [0, 32], sizes = [8, 32], strides = [1, 1]} : vector<8x128xf32> to vector<8x32xf32>
    %38 = arith.addf %36, %37 : vector<8x32xf32>
    %39 = arith.negf %38 : vector<8x32xf32>
    %40 = math.exp %39 : vector<8x32xf32>
    %cst_24 = arith.constant 1.000000e+00 : f32
    %41 = vector.broadcast %cst_24 : f32 to vector<8x32xf32>
    %42 = arith.addf %41, %40 : vector<8x32xf32>
    %43 = arith.divf %41, %42 : vector<8x32xf32>
    %44 = vector.extract_strided_slice %24 {offsets = [0, 64], sizes = [8, 32], strides = [1, 1]} : vector<8x128xf32> to vector<8x32xf32>
    %45 = vector.extract_strided_slice %27 {offsets = [0, 64], sizes = [8, 32], strides = [1, 1]} : vector<8x128xf32> to vector<8x32xf32>
    %46 = arith.mulf %35, %45 : vector<8x32xf32>
    %47 = arith.addf %44, %46 : vector<8x32xf32>
    %48 = math.tanh %47 : vector<8x32xf32>
    %cst_25 = arith.constant 1.000000e+00 : f32
    %49 = vector.broadcast %cst_25 : f32 to vector<8x32xf32>
    %50 = arith.subf %49, %43 : vector<8x32xf32>
    %51 = arith.mulf %50, %48 : vector<8x32xf32>
    %52 = arith.mulf %43, %19 : vector<8x32xf32>
    %53 = arith.addf %51, %52 : vector<8x32xf32>
    %54 = arith.truncf %53 : vector<8x32xf32> to vector<8x32xbf16>
    %cst_26 = arith.constant dense<0.000000e+00> : vector<8x128xf32>
    %55 = tpu.matmul %54, %15, %cst_26 {dimension_numbers = #tpu.dot_dimension_numbers<[1], [0], [0], [1], [0, 0, 1, 1], [], []>} : vector<8x32xbf16>, vector<32x128xbf16>, vector<8x128xf32> -> vector<8x128xf32>
    %56 = arith.addf %55, %18 : vector<8x128xf32>
    %57 = arith.truncf %20 : vector<8x32xf32> to vector<8x32xbf16>
    %cst_27 = arith.constant dense<0.000000e+00> : vector<8x128xf32>
    %58 = tpu.matmul %57, %11, %cst_27 {dimension_numbers = #tpu.dot_dimension_numbers<[1], [0], [0], [1], [0, 0, 1, 1], [], []>} : vector<8x32xbf16>, vector<32x128xbf16>, vector<8x128xf32> -> vector<8x128xf32>
    %59 = arith.addf %58, %14 : vector<8x128xf32>
    %60 = vector.extract_strided_slice %56 {offsets = [0, 0], sizes = [8, 32], strides = [1, 1]} : vector<8x128xf32> to vector<8x32xf32>
    %61 = vector.extract_strided_slice %59 {offsets = [0, 0], sizes = [8, 32], strides = [1, 1]} : vector<8x128xf32> to vector<8x32xf32>
    %62 = arith.addf %60, %61 : vector<8x32xf32>
    %63 = arith.negf %62 : vector<8x32xf32>
    %64 = math.exp %63 : vector<8x32xf32>
    %cst_28 = arith.constant 1.000000e+00 : f32
    %65 = vector.broadcast %cst_28 : f32 to vector<8x32xf32>
    %66 = arith.addf %65, %64 : vector<8x32xf32>
    %67 = arith.divf %65, %66 : vector<8x32xf32>
    %68 = vector.extract_strided_slice %56 {offsets = [0, 32], sizes = [8, 32], strides = [1, 1]} : vector<8x128xf32> to vector<8x32xf32>
    %69 = vector.extract_strided_slice %59 {offsets = [0, 32], sizes = [8, 32], strides = [1, 1]} : vector<8x128xf32> to vector<8x32xf32>
    %70 = arith.addf %68, %69 : vector<8x32xf32>
    %71 = arith.negf %70 : vector<8x32xf32>
    %72 = math.exp %71 : vector<8x32xf32>
    %cst_29 = arith.constant 1.000000e+00 : f32
    %73 = vector.broadcast %cst_29 : f32 to vector<8x32xf32>
    %74 = arith.addf %73, %72 : vector<8x32xf32>
    %75 = arith.divf %73, %74 : vector<8x32xf32>
    %76 = vector.extract_strided_slice %56 {offsets = [0, 64], sizes = [8, 32], strides = [1, 1]} : vector<8x128xf32> to vector<8x32xf32>
    %77 = vector.extract_strided_slice %59 {offsets = [0, 64], sizes = [8, 32], strides = [1, 1]} : vector<8x128xf32> to vector<8x32xf32>
    %78 = arith.mulf %67, %77 : vector<8x32xf32>
    %79 = arith.addf %76, %78 : vector<8x32xf32>
    %80 = math.tanh %79 : vector<8x32xf32>
    %cst_30 = arith.constant 1.000000e+00 : f32
    %81 = vector.broadcast %cst_30 : f32 to vector<8x32xf32>
    %82 = arith.subf %81, %75 : vector<8x32xf32>
    %83 = arith.mulf %82, %80 : vector<8x32xf32>
    %84 = arith.mulf %75, %20 : vector<8x32xf32>
    %85 = arith.addf %83, %84 : vector<8x32xf32>
    %c1_i32 = arith.constant 1 : i32
    %c8_i32_31 = arith.constant 8 : i32
    %86 = arith.muli %c1_i32, %c8_i32_31 : i32
    %87 = tpu.assume_multiple %86, 8 : i32
    %88 = arith.index_cast %87 : i32 to index
    %c0_32 = arith.constant 0 : index
    %89 = vector.load %arg12[%88, %c0_32] : memref<64x128xf32, #tpu.memory_space<vmem>>, vector<8x128xf32>
    %90 = arith.truncf %53 : vector<8x32xf32> to vector<8x32xbf16>
    %cst_33 = arith.constant dense<0.000000e+00> : vector<8x128xf32>
    %91 = tpu.matmul %90, %7, %cst_33 {dimension_numbers = #tpu.dot_dimension_numbers<[1], [0], [0], [1], [0, 0, 1, 1], [], []>} : vector<8x32xbf16>, vector<32x128xbf16>, vector<8x128xf32> -> vector<8x128xf32>
    %92 = arith.addf %91, %10 : vector<8x128xf32>
    %93 = vector.extract_strided_slice %89 {offsets = [0, 0], sizes = [8, 32], strides = [1, 1]} : vector<8x128xf32> to vector<8x32xf32>
    %94 = vector.extract_strided_slice %92 {offsets = [0, 0], sizes = [8, 32], strides = [1, 1]} : vector<8x128xf32> to vector<8x32xf32>
    %95 = arith.addf %93, %94 : vector<8x32xf32>
    %96 = arith.negf %95 : vector<8x32xf32>
    %97 = math.exp %96 : vector<8x32xf32>
    %cst_34 = arith.constant 1.000000e+00 : f32
    %98 = vector.broadcast %cst_34 : f32 to vector<8x32xf32>
    %99 = arith.addf %98, %97 : vector<8x32xf32>
    %100 = arith.divf %98, %99 : vector<8x32xf32>
    %101 = vector.extract_strided_slice %89 {offsets = [0, 32], sizes = [8, 32], strides = [1, 1]} : vector<8x128xf32> to vector<8x32xf32>
    %102 = vector.extract_strided_slice %92 {offsets = [0, 32], sizes = [8, 32], strides = [1, 1]} : vector<8x128xf32> to vector<8x32xf32>
    %103 = arith.addf %101, %102 : vector<8x32xf32>
    %104 = arith.negf %103 : vector<8x32xf32>
    %105 = math.exp %104 : vector<8x32xf32>
    %cst_35 = arith.constant 1.000000e+00 : f32
    %106 = vector.broadcast %cst_35 : f32 to vector<8x32xf32>
    %107 = arith.addf %106, %105 : vector<8x32xf32>
    %108 = arith.divf %106, %107 : vector<8x32xf32>
    %109 = vector.extract_strided_slice %89 {offsets = [0, 64], sizes = [8, 32], strides = [1, 1]} : vector<8x128xf32> to vector<8x32xf32>
    %110 = vector.extract_strided_slice %92 {offsets = [0, 64], sizes = [8, 32], strides = [1, 1]} : vector<8x128xf32> to vector<8x32xf32>
    %111 = arith.mulf %100, %110 : vector<8x32xf32>
    %112 = arith.addf %109, %111 : vector<8x32xf32>
    %113 = math.tanh %112 : vector<8x32xf32>
    %cst_36 = arith.constant 1.000000e+00 : f32
    %114 = vector.broadcast %cst_36 : f32 to vector<8x32xf32>
    %115 = arith.subf %114, %108 : vector<8x32xf32>
    %116 = arith.mulf %115, %113 : vector<8x32xf32>
    %117 = arith.mulf %108, %53 : vector<8x32xf32>
    %118 = arith.addf %116, %117 : vector<8x32xf32>
    %119 = arith.truncf %118 : vector<8x32xf32> to vector<8x32xbf16>
    %cst_37 = arith.constant dense<0.000000e+00> : vector<8x128xf32>
    %120 = tpu.matmul %119, %15, %cst_37 {dimension_numbers = #tpu.dot_dimension_numbers<[1], [0], [0], [1], [0, 0, 1, 1], [], []>} : vector<8x32xbf16>, vector<32x128xbf16>, vector<8x128xf32> -> vector<8x128xf32>
    %121 = arith.addf %120, %18 : vector<8x128xf32>
    %122 = arith.truncf %85 : vector<8x32xf32> to vector<8x32xbf16>
    %cst_38 = arith.constant dense<0.000000e+00> : vector<8x128xf32>
    %123 = tpu.matmul %122, %11, %cst_38 {dimension_numbers = #tpu.dot_dimension_numbers<[1], [0], [0], [1], [0, 0, 1, 1], [], []>} : vector<8x32xbf16>, vector<32x128xbf16>, vector<8x128xf32> -> vector<8x128xf32>
    %124 = arith.addf %123, %14 : vector<8x128xf32>
    %125 = vector.extract_strided_slice %121 {offsets = [0, 0], sizes = [8, 32], strides = [1, 1]} : vector<8x128xf32> to vector<8x32xf32>
    %126 = vector.extract_strided_slice %124 {offsets = [0, 0], sizes = [8, 32], strides = [1, 1]} : vector<8x128xf32> to vector<8x32xf32>
    %127 = arith.addf %125, %126 : vector<8x32xf32>
    %128 = arith.negf %127 : vector<8x32xf32>
    %129 = math.exp %128 : vector<8x32xf32>
    %cst_39 = arith.constant 1.000000e+00 : f32
    %130 = vector.broadcast %cst_39 : f32 to vector<8x32xf32>
    %131 = arith.addf %130, %129 : vector<8x32xf32>
    %132 = arith.divf %130, %131 : vector<8x32xf32>
    %133 = vector.extract_strided_slice %121 {offsets = [0, 32], sizes = [8, 32], strides = [1, 1]} : vector<8x128xf32> to vector<8x32xf32>
    %134 = vector.extract_strided_slice %124 {offsets = [0, 32], sizes = [8, 32], strides = [1, 1]} : vector<8x128xf32> to vector<8x32xf32>
    %135 = arith.addf %133, %134 : vector<8x32xf32>
    %136 = arith.negf %135 : vector<8x32xf32>
    %137 = math.exp %136 : vector<8x32xf32>
    %cst_40 = arith.constant 1.000000e+00 : f32
    %138 = vector.broadcast %cst_40 : f32 to vector<8x32xf32>
    %139 = arith.addf %138, %137 : vector<8x32xf32>
    %140 = arith.divf %138, %139 : vector<8x32xf32>
    %141 = vector.extract_strided_slice %121 {offsets = [0, 64], sizes = [8, 32], strides = [1, 1]} : vector<8x128xf32> to vector<8x32xf32>
    %142 = vector.extract_strided_slice %124 {offsets = [0, 64], sizes = [8, 32], strides = [1, 1]} : vector<8x128xf32> to vector<8x32xf32>
    %143 = arith.mulf %132, %142 : vector<8x32xf32>
    %144 = arith.addf %141, %143 : vector<8x32xf32>
    %145 = math.tanh %144 : vector<8x32xf32>
    %cst_41 = arith.constant 1.000000e+00 : f32
    %146 = vector.broadcast %cst_41 : f32 to vector<8x32xf32>
    %147 = arith.subf %146, %140 : vector<8x32xf32>
    %148 = arith.mulf %147, %145 : vector<8x32xf32>
    %149 = arith.mulf %140, %85 : vector<8x32xf32>
    %150 = arith.addf %148, %149 : vector<8x32xf32>
    %c2_i32 = arith.constant 2 : i32
    %c8_i32_42 = arith.constant 8 : i32
    %151 = arith.muli %c2_i32, %c8_i32_42 : i32
    %152 = tpu.assume_multiple %151, 8 : i32
    %153 = arith.index_cast %152 : i32 to index
    %c0_43 = arith.constant 0 : index
    %154 = vector.load %arg12[%153, %c0_43] : memref<64x128xf32, #tpu.memory_space<vmem>>, vector<8x128xf32>
    %155 = arith.truncf %118 : vector<8x32xf32> to vector<8x32xbf16>
    %cst_44 = arith.constant dense<0.000000e+00> : vector<8x128xf32>
    %156 = tpu.matmul %155, %7, %cst_44 {dimension_numbers = #tpu.dot_dimension_numbers<[1], [0], [0], [1], [0, 0, 1, 1], [], []>} : vector<8x32xbf16>, vector<32x128xbf16>, vector<8x128xf32> -> vector<8x128xf32>
    %157 = arith.addf %156, %10 : vector<8x128xf32>
    %158 = vector.extract_strided_slice %154 {offsets = [0, 0], sizes = [8, 32], strides = [1, 1]} : vector<8x128xf32> to vector<8x32xf32>
    %159 = vector.extract_strided_slice %157 {offsets = [0, 0], sizes = [8, 32], strides = [1, 1]} : vector<8x128xf32> to vector<8x32xf32>
    %160 = arith.addf %158, %159 : vector<8x32xf32>
    %161 = arith.negf %160 : vector<8x32xf32>
    %162 = math.exp %161 : vector<8x32xf32>
    %cst_45 = arith.constant 1.000000e+00 : f32
    %163 = vector.broadcast %cst_45 : f32 to vector<8x32xf32>
    %164 = arith.addf %163, %162 : vector<8x32xf32>
    %165 = arith.divf %163, %164 : vector<8x32xf32>
    %166 = vector.extract_strided_slice %154 {offsets = [0, 32], sizes = [8, 32], strides = [1, 1]} : vector<8x128xf32> to vector<8x32xf32>
    %167 = vector.extract_strided_slice %157 {offsets = [0, 32], sizes = [8, 32], strides = [1, 1]} : vector<8x128xf32> to vector<8x32xf32>
    %168 = arith.addf %166, %167 : vector<8x32xf32>
    %169 = arith.negf %168 : vector<8x32xf32>
    %170 = math.exp %169 : vector<8x32xf32>
    %cst_46 = arith.constant 1.000000e+00 : f32
    %171 = vector.broadcast %cst_46 : f32 to vector<8x32xf32>
    %172 = arith.addf %171, %170 : vector<8x32xf32>
    %173 = arith.divf %171, %172 : vector<8x32xf32>
    %174 = vector.extract_strided_slice %154 {offsets = [0, 64], sizes = [8, 32], strides = [1, 1]} : vector<8x128xf32> to vector<8x32xf32>
    %175 = vector.extract_strided_slice %157 {offsets = [0, 64], sizes = [8, 32], strides = [1, 1]} : vector<8x128xf32> to vector<8x32xf32>
    %176 = arith.mulf %165, %175 : vector<8x32xf32>
    %177 = arith.addf %174, %176 : vector<8x32xf32>
    %178 = math.tanh %177 : vector<8x32xf32>
    %cst_47 = arith.constant 1.000000e+00 : f32
    %179 = vector.broadcast %cst_47 : f32 to vector<8x32xf32>
    %180 = arith.subf %179, %173 : vector<8x32xf32>
    %181 = arith.mulf %180, %178 : vector<8x32xf32>
    %182 = arith.mulf %173, %118 : vector<8x32xf32>
    %183 = arith.addf %181, %182 : vector<8x32xf32>
    %184 = arith.truncf %183 : vector<8x32xf32> to vector<8x32xbf16>
    %cst_48 = arith.constant dense<0.000000e+00> : vector<8x128xf32>
    %185 = tpu.matmul %184, %15, %cst_48 {dimension_numbers = #tpu.dot_dimension_numbers<[1], [0], [0], [1], [0, 0, 1, 1], [], []>} : vector<8x32xbf16>, vector<32x128xbf16>, vector<8x128xf32> -> vector<8x128xf32>
    %186 = arith.addf %185, %18 : vector<8x128xf32>
    %187 = arith.truncf %150 : vector<8x32xf32> to vector<8x32xbf16>
    %cst_49 = arith.constant dense<0.000000e+00> : vector<8x128xf32>
    %188 = tpu.matmul %187, %11, %cst_49 {dimension_numbers = #tpu.dot_dimension_numbers<[1], [0], [0], [1], [0, 0, 1, 1], [], []>} : vector<8x32xbf16>, vector<32x128xbf16>, vector<8x128xf32> -> vector<8x128xf32>
    %189 = arith.addf %188, %14 : vector<8x128xf32>
    %190 = vector.extract_strided_slice %186 {offsets = [0, 0], sizes = [8, 32], strides = [1, 1]} : vector<8x128xf32> to vector<8x32xf32>
    %191 = vector.extract_strided_slice %189 {offsets = [0, 0], sizes = [8, 32], strides = [1, 1]} : vector<8x128xf32> to vector<8x32xf32>
    %192 = arith.addf %190, %191 : vector<8x32xf32>
    %193 = arith.negf %192 : vector<8x32xf32>
    %194 = math.exp %193 : vector<8x32xf32>
    %cst_50 = arith.constant 1.000000e+00 : f32
    %195 = vector.broadcast %cst_50 : f32 to vector<8x32xf32>
    %196 = arith.addf %195, %194 : vector<8x32xf32>
    %197 = arith.divf %195, %196 : vector<8x32xf32>
    %198 = vector.extract_strided_slice %186 {offsets = [0, 32], sizes = [8, 32], strides = [1, 1]} : vector<8x128xf32> to vector<8x32xf32>
    %199 = vector.extract_strided_slice %189 {offsets = [0, 32], sizes = [8, 32], strides = [1, 1]} : vector<8x128xf32> to vector<8x32xf32>
    %200 = arith.addf %198, %199 : vector<8x32xf32>
    %201 = arith.negf %200 : vector<8x32xf32>
    %202 = math.exp %201 : vector<8x32xf32>
    %cst_51 = arith.constant 1.000000e+00 : f32
    %203 = vector.broadcast %cst_51 : f32 to vector<8x32xf32>
    %204 = arith.addf %203, %202 : vector<8x32xf32>
    %205 = arith.divf %203, %204 : vector<8x32xf32>
    %206 = vector.extract_strided_slice %186 {offsets = [0, 64], sizes = [8, 32], strides = [1, 1]} : vector<8x128xf32> to vector<8x32xf32>
    %207 = vector.extract_strided_slice %189 {offsets = [0, 64], sizes = [8, 32], strides = [1, 1]} : vector<8x128xf32> to vector<8x32xf32>
    %208 = arith.mulf %197, %207 : vector<8x32xf32>
    %209 = arith.addf %206, %208 : vector<8x32xf32>
    %210 = math.tanh %209 : vector<8x32xf32>
    %cst_52 = arith.constant 1.000000e+00 : f32
    %211 = vector.broadcast %cst_52 : f32 to vector<8x32xf32>
    %212 = arith.subf %211, %205 : vector<8x32xf32>
    %213 = arith.mulf %212, %210 : vector<8x32xf32>
    %214 = arith.mulf %205, %150 : vector<8x32xf32>
    %215 = arith.addf %213, %214 : vector<8x32xf32>
    %c3_i32 = arith.constant 3 : i32
    %c8_i32_53 = arith.constant 8 : i32
    %216 = arith.muli %c3_i32, %c8_i32_53 : i32
    %217 = tpu.assume_multiple %216, 8 : i32
    %218 = arith.index_cast %217 : i32 to index
    %c0_54 = arith.constant 0 : index
    %219 = vector.load %arg12[%218, %c0_54] : memref<64x128xf32, #tpu.memory_space<vmem>>, vector<8x128xf32>
    %220 = arith.truncf %183 : vector<8x32xf32> to vector<8x32xbf16>
    %cst_55 = arith.constant dense<0.000000e+00> : vector<8x128xf32>
    %221 = tpu.matmul %220, %7, %cst_55 {dimension_numbers = #tpu.dot_dimension_numbers<[1], [0], [0], [1], [0, 0, 1, 1], [], []>} : vector<8x32xbf16>, vector<32x128xbf16>, vector<8x128xf32> -> vector<8x128xf32>
    %222 = arith.addf %221, %10 : vector<8x128xf32>
    %223 = vector.extract_strided_slice %219 {offsets = [0, 0], sizes = [8, 32], strides = [1, 1]} : vector<8x128xf32> to vector<8x32xf32>
    %224 = vector.extract_strided_slice %222 {offsets = [0, 0], sizes = [8, 32], strides = [1, 1]} : vector<8x128xf32> to vector<8x32xf32>
    %225 = arith.addf %223, %224 : vector<8x32xf32>
    %226 = arith.negf %225 : vector<8x32xf32>
    %227 = math.exp %226 : vector<8x32xf32>
    %cst_56 = arith.constant 1.000000e+00 : f32
    %228 = vector.broadcast %cst_56 : f32 to vector<8x32xf32>
    %229 = arith.addf %228, %227 : vector<8x32xf32>
    %230 = arith.divf %228, %229 : vector<8x32xf32>
    %231 = vector.extract_strided_slice %219 {offsets = [0, 32], sizes = [8, 32], strides = [1, 1]} : vector<8x128xf32> to vector<8x32xf32>
    %232 = vector.extract_strided_slice %222 {offsets = [0, 32], sizes = [8, 32], strides = [1, 1]} : vector<8x128xf32> to vector<8x32xf32>
    %233 = arith.addf %231, %232 : vector<8x32xf32>
    %234 = arith.negf %233 : vector<8x32xf32>
    %235 = math.exp %234 : vector<8x32xf32>
    %cst_57 = arith.constant 1.000000e+00 : f32
    %236 = vector.broadcast %cst_57 : f32 to vector<8x32xf32>
    %237 = arith.addf %236, %235 : vector<8x32xf32>
    %238 = arith.divf %236, %237 : vector<8x32xf32>
    %239 = vector.extract_strided_slice %219 {offsets = [0, 64], sizes = [8, 32], strides = [1, 1]} : vector<8x128xf32> to vector<8x32xf32>
    %240 = vector.extract_strided_slice %222 {offsets = [0, 64], sizes = [8, 32], strides = [1, 1]} : vector<8x128xf32> to vector<8x32xf32>
    %241 = arith.mulf %230, %240 : vector<8x32xf32>
    %242 = arith.addf %239, %241 : vector<8x32xf32>
    %243 = math.tanh %242 : vector<8x32xf32>
    %cst_58 = arith.constant 1.000000e+00 : f32
    %244 = vector.broadcast %cst_58 : f32 to vector<8x32xf32>
    %245 = arith.subf %244, %238 : vector<8x32xf32>
    %246 = arith.mulf %245, %243 : vector<8x32xf32>
    %247 = arith.mulf %238, %183 : vector<8x32xf32>
    %248 = arith.addf %246, %247 : vector<8x32xf32>
    %249 = arith.truncf %248 : vector<8x32xf32> to vector<8x32xbf16>
    %cst_59 = arith.constant dense<0.000000e+00> : vector<8x128xf32>
    %250 = tpu.matmul %249, %15, %cst_59 {dimension_numbers = #tpu.dot_dimension_numbers<[1], [0], [0], [1], [0, 0, 1, 1], [], []>} : vector<8x32xbf16>, vector<32x128xbf16>, vector<8x128xf32> -> vector<8x128xf32>
    %251 = arith.addf %250, %18 : vector<8x128xf32>
    %252 = arith.truncf %215 : vector<8x32xf32> to vector<8x32xbf16>
    %cst_60 = arith.constant dense<0.000000e+00> : vector<8x128xf32>
    %253 = tpu.matmul %252, %11, %cst_60 {dimension_numbers = #tpu.dot_dimension_numbers<[1], [0], [0], [1], [0, 0, 1, 1], [], []>} : vector<8x32xbf16>, vector<32x128xbf16>, vector<8x128xf32> -> vector<8x128xf32>
    %254 = arith.addf %253, %14 : vector<8x128xf32>
    %255 = vector.extract_strided_slice %251 {offsets = [0, 0], sizes = [8, 32], strides = [1, 1]} : vector<8x128xf32> to vector<8x32xf32>
    %256 = vector.extract_strided_slice %254 {offsets = [0, 0], sizes = [8, 32], strides = [1, 1]} : vector<8x128xf32> to vector<8x32xf32>
    %257 = arith.addf %255, %256 : vector<8x32xf32>
    %258 = arith.negf %257 : vector<8x32xf32>
    %259 = math.exp %258 : vector<8x32xf32>
    %cst_61 = arith.constant 1.000000e+00 : f32
    %260 = vector.broadcast %cst_61 : f32 to vector<8x32xf32>
    %261 = arith.addf %260, %259 : vector<8x32xf32>
    %262 = arith.divf %260, %261 : vector<8x32xf32>
    %263 = vector.extract_strided_slice %251 {offsets = [0, 32], sizes = [8, 32], strides = [1, 1]} : vector<8x128xf32> to vector<8x32xf32>
    %264 = vector.extract_strided_slice %254 {offsets = [0, 32], sizes = [8, 32], strides = [1, 1]} : vector<8x128xf32> to vector<8x32xf32>
    %265 = arith.addf %263, %264 : vector<8x32xf32>
    %266 = arith.negf %265 : vector<8x32xf32>
    %267 = math.exp %266 : vector<8x32xf32>
    %cst_62 = arith.constant 1.000000e+00 : f32
    %268 = vector.broadcast %cst_62 : f32 to vector<8x32xf32>
    %269 = arith.addf %268, %267 : vector<8x32xf32>
    %270 = arith.divf %268, %269 : vector<8x32xf32>
    %271 = vector.extract_strided_slice %251 {offsets = [0, 64], sizes = [8, 32], strides = [1, 1]} : vector<8x128xf32> to vector<8x32xf32>
    %272 = vector.extract_strided_slice %254 {offsets = [0, 64], sizes = [8, 32], strides = [1, 1]} : vector<8x128xf32> to vector<8x32xf32>
    %273 = arith.mulf %262, %272 : vector<8x32xf32>
    %274 = arith.addf %271, %273 : vector<8x32xf32>
    %275 = math.tanh %274 : vector<8x32xf32>
    %cst_63 = arith.constant 1.000000e+00 : f32
    %276 = vector.broadcast %cst_63 : f32 to vector<8x32xf32>
    %277 = arith.subf %276, %270 : vector<8x32xf32>
    %278 = arith.mulf %277, %275 : vector<8x32xf32>
    %279 = arith.mulf %270, %215 : vector<8x32xf32>
    %280 = arith.addf %278, %279 : vector<8x32xf32>
    %c4_i32 = arith.constant 4 : i32
    %c8_i32_64 = arith.constant 8 : i32
    %281 = arith.muli %c4_i32, %c8_i32_64 : i32
    %282 = tpu.assume_multiple %281, 8 : i32
    %283 = arith.index_cast %282 : i32 to index
    %c0_65 = arith.constant 0 : index
    %284 = vector.load %arg12[%283, %c0_65] : memref<64x128xf32, #tpu.memory_space<vmem>>, vector<8x128xf32>
    %285 = arith.truncf %248 : vector<8x32xf32> to vector<8x32xbf16>
    %cst_66 = arith.constant dense<0.000000e+00> : vector<8x128xf32>
    %286 = tpu.matmul %285, %7, %cst_66 {dimension_numbers = #tpu.dot_dimension_numbers<[1], [0], [0], [1], [0, 0, 1, 1], [], []>} : vector<8x32xbf16>, vector<32x128xbf16>, vector<8x128xf32> -> vector<8x128xf32>
    %287 = arith.addf %286, %10 : vector<8x128xf32>
    %288 = vector.extract_strided_slice %284 {offsets = [0, 0], sizes = [8, 32], strides = [1, 1]} : vector<8x128xf32> to vector<8x32xf32>
    %289 = vector.extract_strided_slice %287 {offsets = [0, 0], sizes = [8, 32], strides = [1, 1]} : vector<8x128xf32> to vector<8x32xf32>
    %290 = arith.addf %288, %289 : vector<8x32xf32>
    %291 = arith.negf %290 : vector<8x32xf32>
    %292 = math.exp %291 : vector<8x32xf32>
    %cst_67 = arith.constant 1.000000e+00 : f32
    %293 = vector.broadcast %cst_67 : f32 to vector<8x32xf32>
    %294 = arith.addf %293, %292 : vector<8x32xf32>
    %295 = arith.divf %293, %294 : vector<8x32xf32>
    %296 = vector.extract_strided_slice %284 {offsets = [0, 32], sizes = [8, 32], strides = [1, 1]} : vector<8x128xf32> to vector<8x32xf32>
    %297 = vector.extract_strided_slice %287 {offsets = [0, 32], sizes = [8, 32], strides = [1, 1]} : vector<8x128xf32> to vector<8x32xf32>
    %298 = arith.addf %296, %297 : vector<8x32xf32>
    %299 = arith.negf %298 : vector<8x32xf32>
    %300 = math.exp %299 : vector<8x32xf32>
    %cst_68 = arith.constant 1.000000e+00 : f32
    %301 = vector.broadcast %cst_68 : f32 to vector<8x32xf32>
    %302 = arith.addf %301, %300 : vector<8x32xf32>
    %303 = arith.divf %301, %302 : vector<8x32xf32>
    %304 = vector.extract_strided_slice %284 {offsets = [0, 64], sizes = [8, 32], strides = [1, 1]} : vector<8x128xf32> to vector<8x32xf32>
    %305 = vector.extract_strided_slice %287 {offsets = [0, 64], sizes = [8, 32], strides = [1, 1]} : vector<8x128xf32> to vector<8x32xf32>
    %306 = arith.mulf %295, %305 : vector<8x32xf32>
    %307 = arith.addf %304, %306 : vector<8x32xf32>
    %308 = math.tanh %307 : vector<8x32xf32>
    %cst_69 = arith.constant 1.000000e+00 : f32
    %309 = vector.broadcast %cst_69 : f32 to vector<8x32xf32>
    %310 = arith.subf %309, %303 : vector<8x32xf32>
    %311 = arith.mulf %310, %308 : vector<8x32xf32>
    %312 = arith.mulf %303, %248 : vector<8x32xf32>
    %313 = arith.addf %311, %312 : vector<8x32xf32>
    %314 = arith.truncf %313 : vector<8x32xf32> to vector<8x32xbf16>
    %cst_70 = arith.constant dense<0.000000e+00> : vector<8x128xf32>
    %315 = tpu.matmul %314, %15, %cst_70 {dimension_numbers = #tpu.dot_dimension_numbers<[1], [0], [0], [1], [0, 0, 1, 1], [], []>} : vector<8x32xbf16>, vector<32x128xbf16>, vector<8x128xf32> -> vector<8x128xf32>
    %316 = arith.addf %315, %18 : vector<8x128xf32>
    %317 = arith.truncf %280 : vector<8x32xf32> to vector<8x32xbf16>
    %cst_71 = arith.constant dense<0.000000e+00> : vector<8x128xf32>
    %318 = tpu.matmul %317, %11, %cst_71 {dimension_numbers = #tpu.dot_dimension_numbers<[1], [0], [0], [1], [0, 0, 1, 1], [], []>} : vector<8x32xbf16>, vector<32x128xbf16>, vector<8x128xf32> -> vector<8x128xf32>
    %319 = arith.addf %318, %14 : vector<8x128xf32>
    %320 = vector.extract_strided_slice %316 {offsets = [0, 0], sizes = [8, 32], strides = [1, 1]} : vector<8x128xf32> to vector<8x32xf32>
    %321 = vector.extract_strided_slice %319 {offsets = [0, 0], sizes = [8, 32], strides = [1, 1]} : vector<8x128xf32> to vector<8x32xf32>
    %322 = arith.addf %320, %321 : vector<8x32xf32>
    %323 = arith.negf %322 : vector<8x32xf32>
    %324 = math.exp %323 : vector<8x32xf32>
    %cst_72 = arith.constant 1.000000e+00 : f32
    %325 = vector.broadcast %cst_72 : f32 to vector<8x32xf32>
    %326 = arith.addf %325, %324 : vector<8x32xf32>
    %327 = arith.divf %325, %326 : vector<8x32xf32>
    %328 = vector.extract_strided_slice %316 {offsets = [0, 32], sizes = [8, 32], strides = [1, 1]} : vector<8x128xf32> to vector<8x32xf32>
    %329 = vector.extract_strided_slice %319 {offsets = [0, 32], sizes = [8, 32], strides = [1, 1]} : vector<8x128xf32> to vector<8x32xf32>
    %330 = arith.addf %328, %329 : vector<8x32xf32>
    %331 = arith.negf %330 : vector<8x32xf32>
    %332 = math.exp %331 : vector<8x32xf32>
    %cst_73 = arith.constant 1.000000e+00 : f32
    %333 = vector.broadcast %cst_73 : f32 to vector<8x32xf32>
    %334 = arith.addf %333, %332 : vector<8x32xf32>
    %335 = arith.divf %333, %334 : vector<8x32xf32>
    %336 = vector.extract_strided_slice %316 {offsets = [0, 64], sizes = [8, 32], strides = [1, 1]} : vector<8x128xf32> to vector<8x32xf32>
    %337 = vector.extract_strided_slice %319 {offsets = [0, 64], sizes = [8, 32], strides = [1, 1]} : vector<8x128xf32> to vector<8x32xf32>
    %338 = arith.mulf %327, %337 : vector<8x32xf32>
    %339 = arith.addf %336, %338 : vector<8x32xf32>
    %340 = math.tanh %339 : vector<8x32xf32>
    %cst_74 = arith.constant 1.000000e+00 : f32
    %341 = vector.broadcast %cst_74 : f32 to vector<8x32xf32>
    %342 = arith.subf %341, %335 : vector<8x32xf32>
    %343 = arith.mulf %342, %340 : vector<8x32xf32>
    %344 = arith.mulf %335, %280 : vector<8x32xf32>
    %345 = arith.addf %343, %344 : vector<8x32xf32>
    %c5_i32 = arith.constant 5 : i32
    %c8_i32_75 = arith.constant 8 : i32
    %346 = arith.muli %c5_i32, %c8_i32_75 : i32
    %347 = tpu.assume_multiple %346, 8 : i32
    %348 = arith.index_cast %347 : i32 to index
    %c0_76 = arith.constant 0 : index
    %349 = vector.load %arg12[%348, %c0_76] : memref<64x128xf32, #tpu.memory_space<vmem>>, vector<8x128xf32>
    %350 = arith.truncf %313 : vector<8x32xf32> to vector<8x32xbf16>
    %cst_77 = arith.constant dense<0.000000e+00> : vector<8x128xf32>
    %351 = tpu.matmul %350, %7, %cst_77 {dimension_numbers = #tpu.dot_dimension_numbers<[1], [0], [0], [1], [0, 0, 1, 1], [], []>} : vector<8x32xbf16>, vector<32x128xbf16>, vector<8x128xf32> -> vector<8x128xf32>
    %352 = arith.addf %351, %10 : vector<8x128xf32>
    %353 = vector.extract_strided_slice %349 {offsets = [0, 0], sizes = [8, 32], strides = [1, 1]} : vector<8x128xf32> to vector<8x32xf32>
    %354 = vector.extract_strided_slice %352 {offsets = [0, 0], sizes = [8, 32], strides = [1, 1]} : vector<8x128xf32> to vector<8x32xf32>
    %355 = arith.addf %353, %354 : vector<8x32xf32>
    %356 = arith.negf %355 : vector<8x32xf32>
    %357 = math.exp %356 : vector<8x32xf32>
    %cst_78 = arith.constant 1.000000e+00 : f32
    %358 = vector.broadcast %cst_78 : f32 to vector<8x32xf32>
    %359 = arith.addf %358, %357 : vector<8x32xf32>
    %360 = arith.divf %358, %359 : vector<8x32xf32>
    %361 = vector.extract_strided_slice %349 {offsets = [0, 32], sizes = [8, 32], strides = [1, 1]} : vector<8x128xf32> to vector<8x32xf32>
    %362 = vector.extract_strided_slice %352 {offsets = [0, 32], sizes = [8, 32], strides = [1, 1]} : vector<8x128xf32> to vector<8x32xf32>
    %363 = arith.addf %361, %362 : vector<8x32xf32>
    %364 = arith.negf %363 : vector<8x32xf32>
    %365 = math.exp %364 : vector<8x32xf32>
    %cst_79 = arith.constant 1.000000e+00 : f32
    %366 = vector.broadcast %cst_79 : f32 to vector<8x32xf32>
    %367 = arith.addf %366, %365 : vector<8x32xf32>
    %368 = arith.divf %366, %367 : vector<8x32xf32>
    %369 = vector.extract_strided_slice %349 {offsets = [0, 64], sizes = [8, 32], strides = [1, 1]} : vector<8x128xf32> to vector<8x32xf32>
    %370 = vector.extract_strided_slice %352 {offsets = [0, 64], sizes = [8, 32], strides = [1, 1]} : vector<8x128xf32> to vector<8x32xf32>
    %371 = arith.mulf %360, %370 : vector<8x32xf32>
    %372 = arith.addf %369, %371 : vector<8x32xf32>
    %373 = math.tanh %372 : vector<8x32xf32>
    %cst_80 = arith.constant 1.000000e+00 : f32
    %374 = vector.broadcast %cst_80 : f32 to vector<8x32xf32>
    %375 = arith.subf %374, %368 : vector<8x32xf32>
    %376 = arith.mulf %375, %373 : vector<8x32xf32>
    %377 = arith.mulf %368, %313 : vector<8x32xf32>
    %378 = arith.addf %376, %377 : vector<8x32xf32>
    %379 = arith.truncf %378 : vector<8x32xf32> to vector<8x32xbf16>
    %cst_81 = arith.constant dense<0.000000e+00> : vector<8x128xf32>
    %380 = tpu.matmul %379, %15, %cst_81 {dimension_numbers = #tpu.dot_dimension_numbers<[1], [0], [0], [1], [0, 0, 1, 1], [], []>} : vector<8x32xbf16>, vector<32x128xbf16>, vector<8x128xf32> -> vector<8x128xf32>
    %381 = arith.addf %380, %18 : vector<8x128xf32>
    %382 = arith.truncf %345 : vector<8x32xf32> to vector<8x32xbf16>
    %cst_82 = arith.constant dense<0.000000e+00> : vector<8x128xf32>
    %383 = tpu.matmul %382, %11, %cst_82 {dimension_numbers = #tpu.dot_dimension_numbers<[1], [0], [0], [1], [0, 0, 1, 1], [], []>} : vector<8x32xbf16>, vector<32x128xbf16>, vector<8x128xf32> -> vector<8x128xf32>
    %384 = arith.addf %383, %14 : vector<8x128xf32>
    %385 = vector.extract_strided_slice %381 {offsets = [0, 0], sizes = [8, 32], strides = [1, 1]} : vector<8x128xf32> to vector<8x32xf32>
    %386 = vector.extract_strided_slice %384 {offsets = [0, 0], sizes = [8, 32], strides = [1, 1]} : vector<8x128xf32> to vector<8x32xf32>
    %387 = arith.addf %385, %386 : vector<8x32xf32>
    %388 = arith.negf %387 : vector<8x32xf32>
    %389 = math.exp %388 : vector<8x32xf32>
    %cst_83 = arith.constant 1.000000e+00 : f32
    %390 = vector.broadcast %cst_83 : f32 to vector<8x32xf32>
    %391 = arith.addf %390, %389 : vector<8x32xf32>
    %392 = arith.divf %390, %391 : vector<8x32xf32>
    %393 = vector.extract_strided_slice %381 {offsets = [0, 32], sizes = [8, 32], strides = [1, 1]} : vector<8x128xf32> to vector<8x32xf32>
    %394 = vector.extract_strided_slice %384 {offsets = [0, 32], sizes = [8, 32], strides = [1, 1]} : vector<8x128xf32> to vector<8x32xf32>
    %395 = arith.addf %393, %394 : vector<8x32xf32>
    %396 = arith.negf %395 : vector<8x32xf32>
    %397 = math.exp %396 : vector<8x32xf32>
    %cst_84 = arith.constant 1.000000e+00 : f32
    %398 = vector.broadcast %cst_84 : f32 to vector<8x32xf32>
    %399 = arith.addf %398, %397 : vector<8x32xf32>
    %400 = arith.divf %398, %399 : vector<8x32xf32>
    %401 = vector.extract_strided_slice %381 {offsets = [0, 64], sizes = [8, 32], strides = [1, 1]} : vector<8x128xf32> to vector<8x32xf32>
    %402 = vector.extract_strided_slice %384 {offsets = [0, 64], sizes = [8, 32], strides = [1, 1]} : vector<8x128xf32> to vector<8x32xf32>
    %403 = arith.mulf %392, %402 : vector<8x32xf32>
    %404 = arith.addf %401, %403 : vector<8x32xf32>
    %405 = math.tanh %404 : vector<8x32xf32>
    %cst_85 = arith.constant 1.000000e+00 : f32
    %406 = vector.broadcast %cst_85 : f32 to vector<8x32xf32>
    %407 = arith.subf %406, %400 : vector<8x32xf32>
    %408 = arith.mulf %407, %405 : vector<8x32xf32>
    %409 = arith.mulf %400, %345 : vector<8x32xf32>
    %410 = arith.addf %408, %409 : vector<8x32xf32>
    %c6_i32 = arith.constant 6 : i32
    %c8_i32_86 = arith.constant 8 : i32
    %411 = arith.muli %c6_i32, %c8_i32_86 : i32
    %412 = tpu.assume_multiple %411, 8 : i32
    %413 = arith.index_cast %412 : i32 to index
    %c0_87 = arith.constant 0 : index
    %414 = vector.load %arg12[%413, %c0_87] : memref<64x128xf32, #tpu.memory_space<vmem>>, vector<8x128xf32>
    %415 = arith.truncf %378 : vector<8x32xf32> to vector<8x32xbf16>
    %cst_88 = arith.constant dense<0.000000e+00> : vector<8x128xf32>
    %416 = tpu.matmul %415, %7, %cst_88 {dimension_numbers = #tpu.dot_dimension_numbers<[1], [0], [0], [1], [0, 0, 1, 1], [], []>} : vector<8x32xbf16>, vector<32x128xbf16>, vector<8x128xf32> -> vector<8x128xf32>
    %417 = arith.addf %416, %10 : vector<8x128xf32>
    %418 = vector.extract_strided_slice %414 {offsets = [0, 0], sizes = [8, 32], strides = [1, 1]} : vector<8x128xf32> to vector<8x32xf32>
    %419 = vector.extract_strided_slice %417 {offsets = [0, 0], sizes = [8, 32], strides = [1, 1]} : vector<8x128xf32> to vector<8x32xf32>
    %420 = arith.addf %418, %419 : vector<8x32xf32>
    %421 = arith.negf %420 : vector<8x32xf32>
    %422 = math.exp %421 : vector<8x32xf32>
    %cst_89 = arith.constant 1.000000e+00 : f32
    %423 = vector.broadcast %cst_89 : f32 to vector<8x32xf32>
    %424 = arith.addf %423, %422 : vector<8x32xf32>
    %425 = arith.divf %423, %424 : vector<8x32xf32>
    %426 = vector.extract_strided_slice %414 {offsets = [0, 32], sizes = [8, 32], strides = [1, 1]} : vector<8x128xf32> to vector<8x32xf32>
    %427 = vector.extract_strided_slice %417 {offsets = [0, 32], sizes = [8, 32], strides = [1, 1]} : vector<8x128xf32> to vector<8x32xf32>
    %428 = arith.addf %426, %427 : vector<8x32xf32>
    %429 = arith.negf %428 : vector<8x32xf32>
    %430 = math.exp %429 : vector<8x32xf32>
    %cst_90 = arith.constant 1.000000e+00 : f32
    %431 = vector.broadcast %cst_90 : f32 to vector<8x32xf32>
    %432 = arith.addf %431, %430 : vector<8x32xf32>
    %433 = arith.divf %431, %432 : vector<8x32xf32>
    %434 = vector.extract_strided_slice %414 {offsets = [0, 64], sizes = [8, 32], strides = [1, 1]} : vector<8x128xf32> to vector<8x32xf32>
    %435 = vector.extract_strided_slice %417 {offsets = [0, 64], sizes = [8, 32], strides = [1, 1]} : vector<8x128xf32> to vector<8x32xf32>
    %436 = arith.mulf %425, %435 : vector<8x32xf32>
    %437 = arith.addf %434, %436 : vector<8x32xf32>
    %438 = math.tanh %437 : vector<8x32xf32>
    %cst_91 = arith.constant 1.000000e+00 : f32
    %439 = vector.broadcast %cst_91 : f32 to vector<8x32xf32>
    %440 = arith.subf %439, %433 : vector<8x32xf32>
    %441 = arith.mulf %440, %438 : vector<8x32xf32>
    %442 = arith.mulf %433, %378 : vector<8x32xf32>
    %443 = arith.addf %441, %442 : vector<8x32xf32>
    %444 = arith.truncf %443 : vector<8x32xf32> to vector<8x32xbf16>
    %cst_92 = arith.constant dense<0.000000e+00> : vector<8x128xf32>
    %445 = tpu.matmul %444, %15, %cst_92 {dimension_numbers = #tpu.dot_dimension_numbers<[1], [0], [0], [1], [0, 0, 1, 1], [], []>} : vector<8x32xbf16>, vector<32x128xbf16>, vector<8x128xf32> -> vector<8x128xf32>
    %446 = arith.addf %445, %18 : vector<8x128xf32>
    %447 = arith.truncf %410 : vector<8x32xf32> to vector<8x32xbf16>
    %cst_93 = arith.constant dense<0.000000e+00> : vector<8x128xf32>
    %448 = tpu.matmul %447, %11, %cst_93 {dimension_numbers = #tpu.dot_dimension_numbers<[1], [0], [0], [1], [0, 0, 1, 1], [], []>} : vector<8x32xbf16>, vector<32x128xbf16>, vector<8x128xf32> -> vector<8x128xf32>
    %449 = arith.addf %448, %14 : vector<8x128xf32>
    %450 = vector.extract_strided_slice %446 {offsets = [0, 0], sizes = [8, 32], strides = [1, 1]} : vector<8x128xf32> to vector<8x32xf32>
    %451 = vector.extract_strided_slice %449 {offsets = [0, 0], sizes = [8, 32], strides = [1, 1]} : vector<8x128xf32> to vector<8x32xf32>
    %452 = arith.addf %450, %451 : vector<8x32xf32>
    %453 = arith.negf %452 : vector<8x32xf32>
    %454 = math.exp %453 : vector<8x32xf32>
    %cst_94 = arith.constant 1.000000e+00 : f32
    %455 = vector.broadcast %cst_94 : f32 to vector<8x32xf32>
    %456 = arith.addf %455, %454 : vector<8x32xf32>
    %457 = arith.divf %455, %456 : vector<8x32xf32>
    %458 = vector.extract_strided_slice %446 {offsets = [0, 32], sizes = [8, 32], strides = [1, 1]} : vector<8x128xf32> to vector<8x32xf32>
    %459 = vector.extract_strided_slice %449 {offsets = [0, 32], sizes = [8, 32], strides = [1, 1]} : vector<8x128xf32> to vector<8x32xf32>
    %460 = arith.addf %458, %459 : vector<8x32xf32>
    %461 = arith.negf %460 : vector<8x32xf32>
    %462 = math.exp %461 : vector<8x32xf32>
    %cst_95 = arith.constant 1.000000e+00 : f32
    %463 = vector.broadcast %cst_95 : f32 to vector<8x32xf32>
    %464 = arith.addf %463, %462 : vector<8x32xf32>
    %465 = arith.divf %463, %464 : vector<8x32xf32>
    %466 = vector.extract_strided_slice %446 {offsets = [0, 64], sizes = [8, 32], strides = [1, 1]} : vector<8x128xf32> to vector<8x32xf32>
    %467 = vector.extract_strided_slice %449 {offsets = [0, 64], sizes = [8, 32], strides = [1, 1]} : vector<8x128xf32> to vector<8x32xf32>
    %468 = arith.mulf %457, %467 : vector<8x32xf32>
    %469 = arith.addf %466, %468 : vector<8x32xf32>
    %470 = math.tanh %469 : vector<8x32xf32>
    %cst_96 = arith.constant 1.000000e+00 : f32
    %471 = vector.broadcast %cst_96 : f32 to vector<8x32xf32>
    %472 = arith.subf %471, %465 : vector<8x32xf32>
    %473 = arith.mulf %472, %470 : vector<8x32xf32>
    %474 = arith.mulf %465, %410 : vector<8x32xf32>
    %475 = arith.addf %473, %474 : vector<8x32xf32>
    %c7_i32 = arith.constant 7 : i32
    %c8_i32_97 = arith.constant 8 : i32
    %476 = arith.muli %c7_i32, %c8_i32_97 : i32
    %477 = tpu.assume_multiple %476, 8 : i32
    %478 = arith.index_cast %477 : i32 to index
    %c0_98 = arith.constant 0 : index
    %479 = vector.load %arg12[%478, %c0_98] : memref<64x128xf32, #tpu.memory_space<vmem>>, vector<8x128xf32>
    %480 = arith.truncf %443 : vector<8x32xf32> to vector<8x32xbf16>
    %cst_99 = arith.constant dense<0.000000e+00> : vector<8x128xf32>
    %481 = tpu.matmul %480, %7, %cst_99 {dimension_numbers = #tpu.dot_dimension_numbers<[1], [0], [0], [1], [0, 0, 1, 1], [], []>} : vector<8x32xbf16>, vector<32x128xbf16>, vector<8x128xf32> -> vector<8x128xf32>
    %482 = arith.addf %481, %10 : vector<8x128xf32>
    %483 = vector.extract_strided_slice %479 {offsets = [0, 0], sizes = [8, 32], strides = [1, 1]} : vector<8x128xf32> to vector<8x32xf32>
    %484 = vector.extract_strided_slice %482 {offsets = [0, 0], sizes = [8, 32], strides = [1, 1]} : vector<8x128xf32> to vector<8x32xf32>
    %485 = arith.addf %483, %484 : vector<8x32xf32>
    %486 = arith.negf %485 : vector<8x32xf32>
    %487 = math.exp %486 : vector<8x32xf32>
    %cst_100 = arith.constant 1.000000e+00 : f32
    %488 = vector.broadcast %cst_100 : f32 to vector<8x32xf32>
    %489 = arith.addf %488, %487 : vector<8x32xf32>
    %490 = arith.divf %488, %489 : vector<8x32xf32>
    %491 = vector.extract_strided_slice %479 {offsets = [0, 32], sizes = [8, 32], strides = [1, 1]} : vector<8x128xf32> to vector<8x32xf32>
    %492 = vector.extract_strided_slice %482 {offsets = [0, 32], sizes = [8, 32], strides = [1, 1]} : vector<8x128xf32> to vector<8x32xf32>
    %493 = arith.addf %491, %492 : vector<8x32xf32>
    %494 = arith.negf %493 : vector<8x32xf32>
    %495 = math.exp %494 : vector<8x32xf32>
    %cst_101 = arith.constant 1.000000e+00 : f32
    %496 = vector.broadcast %cst_101 : f32 to vector<8x32xf32>
    %497 = arith.addf %496, %495 : vector<8x32xf32>
    %498 = arith.divf %496, %497 : vector<8x32xf32>
    %499 = vector.extract_strided_slice %479 {offsets = [0, 64], sizes = [8, 32], strides = [1, 1]} : vector<8x128xf32> to vector<8x32xf32>
    %500 = vector.extract_strided_slice %482 {offsets = [0, 64], sizes = [8, 32], strides = [1, 1]} : vector<8x128xf32> to vector<8x32xf32>
    %501 = arith.mulf %490, %500 : vector<8x32xf32>
    %502 = arith.addf %499, %501 : vector<8x32xf32>
    %503 = math.tanh %502 : vector<8x32xf32>
    %cst_102 = arith.constant 1.000000e+00 : f32
    %504 = vector.broadcast %cst_102 : f32 to vector<8x32xf32>
    %505 = arith.subf %504, %498 : vector<8x32xf32>
    %506 = arith.mulf %505, %503 : vector<8x32xf32>
    %507 = arith.mulf %498, %443 : vector<8x32xf32>
    %508 = arith.addf %506, %507 : vector<8x32xf32>
    %509 = arith.truncf %508 : vector<8x32xf32> to vector<8x32xbf16>
    %cst_103 = arith.constant dense<0.000000e+00> : vector<8x128xf32>
    %510 = tpu.matmul %509, %15, %cst_103 {dimension_numbers = #tpu.dot_dimension_numbers<[1], [0], [0], [1], [0, 0, 1, 1], [], []>} : vector<8x32xbf16>, vector<32x128xbf16>, vector<8x128xf32> -> vector<8x128xf32>
    %511 = arith.addf %510, %18 : vector<8x128xf32>
    %512 = arith.truncf %475 : vector<8x32xf32> to vector<8x32xbf16>
    %cst_104 = arith.constant dense<0.000000e+00> : vector<8x128xf32>
    %513 = tpu.matmul %512, %11, %cst_104 {dimension_numbers = #tpu.dot_dimension_numbers<[1], [0], [0], [1], [0, 0, 1, 1], [], []>} : vector<8x32xbf16>, vector<32x128xbf16>, vector<8x128xf32> -> vector<8x128xf32>
    %514 = arith.addf %513, %14 : vector<8x128xf32>
    %515 = vector.extract_strided_slice %511 {offsets = [0, 0], sizes = [8, 32], strides = [1, 1]} : vector<8x128xf32> to vector<8x32xf32>
    %516 = vector.extract_strided_slice %514 {offsets = [0, 0], sizes = [8, 32], strides = [1, 1]} : vector<8x128xf32> to vector<8x32xf32>
    %517 = arith.addf %515, %516 : vector<8x32xf32>
    %518 = arith.negf %517 : vector<8x32xf32>
    %519 = math.exp %518 : vector<8x32xf32>
    %cst_105 = arith.constant 1.000000e+00 : f32
    %520 = vector.broadcast %cst_105 : f32 to vector<8x32xf32>
    %521 = arith.addf %520, %519 : vector<8x32xf32>
    %522 = arith.divf %520, %521 : vector<8x32xf32>
    %523 = vector.extract_strided_slice %511 {offsets = [0, 32], sizes = [8, 32], strides = [1, 1]} : vector<8x128xf32> to vector<8x32xf32>
    %524 = vector.extract_strided_slice %514 {offsets = [0, 32], sizes = [8, 32], strides = [1, 1]} : vector<8x128xf32> to vector<8x32xf32>
    %525 = arith.addf %523, %524 : vector<8x32xf32>
    %526 = arith.negf %525 : vector<8x32xf32>
    %527 = math.exp %526 : vector<8x32xf32>
    %cst_106 = arith.constant 1.000000e+00 : f32
    %528 = vector.broadcast %cst_106 : f32 to vector<8x32xf32>
    %529 = arith.addf %528, %527 : vector<8x32xf32>
    %530 = arith.divf %528, %529 : vector<8x32xf32>
    %531 = vector.extract_strided_slice %511 {offsets = [0, 64], sizes = [8, 32], strides = [1, 1]} : vector<8x128xf32> to vector<8x32xf32>
    %532 = vector.extract_strided_slice %514 {offsets = [0, 64], sizes = [8, 32], strides = [1, 1]} : vector<8x128xf32> to vector<8x32xf32>
    %533 = arith.mulf %522, %532 : vector<8x32xf32>
    %534 = arith.addf %531, %533 : vector<8x32xf32>
    %535 = math.tanh %534 : vector<8x32xf32>
    %cst_107 = arith.constant 1.000000e+00 : f32
    %536 = vector.broadcast %cst_107 : f32 to vector<8x32xf32>
    %537 = arith.subf %536, %530 : vector<8x32xf32>
    %538 = arith.mulf %537, %535 : vector<8x32xf32>
    %539 = arith.mulf %530, %475 : vector<8x32xf32>
    %540 = arith.addf %538, %539 : vector<8x32xf32>
    %c8_i32_108 = arith.constant 8 : i32
    %cst_109 = arith.constant 0.000000e+00 : f32
    %541 = vector.broadcast %cst_109 : f32 to vector<8x32xf32>
    %542 = arith.maximumf %540, %541 : vector<8x32xf32>
    %543 = arith.truncf %542 : vector<8x32xf32> to vector<8x32xbf16>
    %c0_110 = arith.constant 0 : index
    %c0_111 = arith.constant 0 : index
    %544 = vector.load %arg9[%c0_110, %c0_111] : memref<32x128xbf16, #tpu.memory_space<vmem>>, vector<32x128xbf16>
    %cst_112 = arith.constant dense<0.000000e+00> : vector<8x128xf32>
    %545 = tpu.matmul %543, %544, %cst_112 {dimension_numbers = #tpu.dot_dimension_numbers<[1], [0], [0], [1], [0, 0, 1, 1], [], []>} : vector<8x32xbf16>, vector<32x128xbf16>, vector<8x128xf32> -> vector<8x128xf32>
    %c0_113 = arith.constant 0 : index
    %c0_114 = arith.constant 0 : index
    %546 = vector.load %arg10[%c0_113, %c0_114] : memref<1x128xf32, #tpu.memory_space<vmem>>, vector<1x128xf32>
    %547 = vector.broadcast %546 : vector<1x128xf32> to vector<8x128xf32>
    %548 = arith.addf %545, %547 : vector<8x128xf32>
    %c0_115 = arith.constant 0 : index
    %c0_116 = arith.constant 0 : index
    %549 = vector.load %arg11[%c0_115, %c0_116] : memref<8x128xf32, #tpu.memory_space<vmem>>, vector<8x128xf32>
    tpu.vector_store %arg11[%c0_115, %c0_116], %548 {strides = array<i32>} : memref<8x128xf32, #tpu.memory_space<vmem>>, vector<8x128xf32>,
    return
  }
}

</mosaic_0001>

<llo_original>
// kernel: tpu_custom_call.1
$region0: #{tpu_custom_call.1}
  #allocation0 [shape = 'u32[]', space=smem, size = 0x4, offset = 0x4, fixed_abs, tag = 'smem constant byte address 0x4 - core index']
  #allocation1 [shape = 'u32[72,128]{1,0:T(1,128)}', space=vmem, size = 0x9000, scoped, tag = 'internal scratch']
  #allocation2 [shape = 'f32[64,128]{1,0:T(8,128)}', space=vmem, size = 0x8000, scoped, tag = 'scratch operand']
  %s0 = inlined_call_operand.vmem [shape: bf16[64,16], index: 0, kind: input, shape index: {}]
  %s1 = inlined_call_operand.hbm [shape: bf16[16,128], index: 1, kind: input, shape index: {}]
  %s2 = inlined_call_operand.hbm [shape: f32[1,128], index: 2, kind: input, shape index: {}]
  %s3 = inlined_call_operand.vmem [shape: bf16[32,128], index: 3, kind: input, shape index: {}]
  %s4 = inlined_call_operand.hbm [shape: f32[1,128], index: 4, kind: input, shape index: {}]
  %s5 = inlined_call_operand.vmem [shape: bf16[32,128], index: 5, kind: input, shape index: {}]
  %s6 = inlined_call_operand.hbm [shape: f32[1,128], index: 6, kind: input, shape index: {}]
  %s7 = inlined_call_operand.hbm [shape: bf16[32,128], index: 7, kind: input, shape index: {}]
  %s8 = inlined_call_operand.hbm [shape: f32[1,128], index: 8, kind: input, shape index: {}]
  %s9 = inlined_call_operand.vmem [shape: bf16[32,128], index: 9, kind: input, shape index: {}]
  %s10 = inlined_call_operand.vmem [shape: f32[1,128], index: 10, kind: input, shape index: {}]
  %s11 = inlined_call_operand.hbm [shape: f32[8,128], index: 11, kind: output, shape index: {}]
  %s12 = sld [smem:[#allocation0]]
  $region78: #{tpu_custom_call.1} parent=0
    _
  %s14 = ssub.s32 1, %s12
  %s15 = scalar_select 0, %s14, %s12
  $region1: #{tpu_custom_call.1} parent=0
    #allocation3 [shape = 'u8[4096]{0}', space=vmem, size = 0x1000, scoped, tag = 'input window, operand 1, single buffered']
    #allocation4 [shape = 's32[1]{0}', space=sflag, size = 0x4, scoped, tag = 'scoped memory for tpu_custom_call.1']
    #allocation5 [shape = 's32[1]{0}', space=sflag, size = 0x4, scoped, tag = 'scoped memory for tpu_custom_call.1']
    #allocation6 [shape = 'u8[512]{0}', space=vmem, size = 0x400, scoped, tag = 'input window, operand 2, single buffered']
    #allocation7 [shape = 's32[1]{0}', space=sflag, size = 0x4, scoped, tag = 'scoped memory for tpu_custom_call.1']
    #allocation8 [shape = 'u8[512]{0}', space=vmem, size = 0x400, scoped, tag = 'input window, operand 4, single buffered']
    #allocation9 [shape = 'u8[512]{0}', space=vmem, size = 0x400, scoped, tag = 'input window, operand 6, single buffered']
    #allocation10 [shape = 's32[1]{0}', space=sflag, size = 0x4, scoped, tag = 'scoped memory for tpu_custom_call.1']
    #allocation11 [shape = 'u8[8192]{0}', space=vmem, size = 0x2000, scoped, tag = 'input window, operand 7, single buffered']
    #allocation12 [shape = 'u8[512]{0}', space=vmem, size = 0x400, scoped, tag = 'input window, operand 8, single buffered']
    #allocation13 [shape = 's32[1]{0}', space=sflag, size = 0x4, scoped, tag = 'scoped memory for tpu_custom_call.1']
    #allocation14 [shape = 'u8[4096]{0}', space=vmem, size = 0x1000, scoped, tag = 'output window, operand 0, single buffered']
    %16 = vsyncpa [#allocation4], 0
    %17 = vsyncpa [#allocation7], 0
    %18 = vsyncpa [#allocation10], 0
    %19 = vsyncpa [#allocation13], 0
    %20 = vsyncpa [#allocation5], 0
    // Predicated region
    $region2: #{tpu_custom_call.1} parent=1 // pred_check
      _
    $region3: #{tpu_custom_call.1} parent=1 // pred_check_branch
      %22 = sbr.rel (0) target = $region5
    $region4: #{tpu_custom_call.1} parent=1 // pred_region
      _
    $region5: #{tpu_custom_call.1} parent=1 // pred_fallthru
      _
    // Predicated region
    $region6: #{tpu_custom_call.1} parent=1 // pred_check
      _
    $region7: #{tpu_custom_call.1} parent=1 // pred_check_branch
      %24 = sbr.rel (0) target = $region9
    $region8: #{tpu_custom_call.1} parent=1 // pred_region
      %26 = vsyncadd [#allocation4], 0
      %s27 = sshll.u32 %s1, 4
      %s28 = int_to_ptr.hbm [resolvable:$true] %s27
      %s29 = sshll.u32 [#allocation3], 4
      %s30 = int_to_ptr.vmem [resolvable:$true] %s29
      %35 = dma.hbm_to_vmem [thread:$0]  %s28, 128, %s30, [#allocation4], 64, 64, 4
    $region9: #{tpu_custom_call.1} parent=1 // pred_fallthru
      _
    // Predicated region
    $region10: #{tpu_custom_call.1} parent=1 // pred_check
      _
    $region11: #{tpu_custom_call.1} parent=1 // pred_check_branch
      %37 = sbr.rel (0) target = $region13
    $region12: #{tpu_custom_call.1} parent=1 // pred_region
      %39 = vsyncadd [#allocation7], 0
      %s41 = sshll.u32 %s2, 4
      %s42 = int_to_ptr.hbm [resolvable:$true] %s41
      %s43 = sshll.u32 [#allocation6], 4
      %s44 = int_to_ptr.vmem [resolvable:$true] %s43
      %46 = dma.hbm_to_vmem [thread:$0]  %s42, 16, %s44, [#allocation7]
    $region13: #{tpu_custom_call.1} parent=1 // pred_fallthru
      _
    // Predicated region
    $region14: #{tpu_custom_call.1} parent=1 // pred_check
      _
    $region15: #{tpu_custom_call.1} parent=1 // pred_check_branch
      %48 = sbr.rel (0) target = $region17
    $region16: #{tpu_custom_call.1} parent=1 // pred_region
      _
    $region17: #{tpu_custom_call.1} parent=1 // pred_fallthru
      _
    // Predicated region
    $region18: #{tpu_custom_call.1} parent=1 // pred_check
      _
    $region19: #{tpu_custom_call.1} parent=1 // pred_check_branch
      %50 = sbr.rel (0) target = $region21
    $region20: #{tpu_custom_call.1} parent=1 // pred_region
      %52 = vsyncadd [#allocation7], 0
      %s54 = sshll.u32 %s4, 4
      %s55 = int_to_ptr.hbm [resolvable:$true] %s54
      %s56 = sshll.u32 [#allocation8], 4
      %s57 = int_to_ptr.vmem [resolvable:$true] %s56
      %59 = dma.hbm_to_vmem [thread:$0]  %s55, 16, %s57, [#allocation7]
    $region21: #{tpu_custom_call.1} parent=1 // pred_fallthru
      _
    // Predicated region
    $region22: #{tpu_custom_call.1} parent=1 // pred_check
      _
    $region23: #{tpu_custom_call.1} parent=1 // pred_check_branch
      %61 = sbr.rel (0) target = $region25
    $region24: #{tpu_custom_call.1} parent=1 // pred_region
      _
    $region25: #{tpu_custom_call.1} parent=1 // pred_fallthru
      _
    // Predicated region
    $region26: #{tpu_custom_call.1} parent=1 // pred_check
      _
    $region27: #{tpu_custom_call.1} parent=1 // pred_check_branch
      %63 = sbr.rel (0) target = $region29
    $region28: #{tpu_custom_call.1} parent=1 // pred_region
      %65 = vsyncadd [#allocation10], 0
      %s67 = sshll.u32 %s6, 4
      %s68 = int_to_ptr.hbm [resolvable:$true] %s67
      %s69 = sshll.u32 [#allocation9], 4
      %s70 = int_to_ptr.vmem [resolvable:$true] %s69
      %72 = dma.hbm_to_vmem [thread:$0]  %s68, 16, %s70, [#allocation10]
    $region29: #{tpu_custom_call.1} parent=1 // pred_fallthru
      _
    // Predicated region
    $region30: #{tpu_custom_call.1} parent=1 // pred_check
      _
    $region31: #{tpu_custom_call.1} parent=1 // pred_check_branch
      %74 = sbr.rel (0) target = $region33
    $region32: #{tpu_custom_call.1} parent=1 // pred_region
      %76 = vsyncadd [#allocation10], 0
      %s77 = sshll.u32 %s7, 4
      %s78 = int_to_ptr.hbm [resolvable:$true] %s77
      %s79 = sshll.u32 [#allocation11], 4
      %s80 = int_to_ptr.vmem [resolvable:$true] %s79
      %85 = dma.hbm_to_vmem [thread:$0]  %s78, 256, %s80, [#allocation10], 64, 64, 4
    $region33: #{tpu_custom_call.1} parent=1 // pred_fallthru
      _
    // Predicated region
    $region34: #{tpu_custom_call.1} parent=1 // pred_check
      _
    $region35: #{tpu_custom_call.1} parent=1 // pred_check_branch
      %87 = sbr.rel (0) target = $region37
    $region36: #{tpu_custom_call.1} parent=1 // pred_region
      %89 = vsyncadd [#allocation13], 0
      %s91 = sshll.u32 %s8, 4
      %s92 = int_to_ptr.hbm [resolvable:$true] %s91
      %s93 = sshll.u32 [#allocation12], 4
      %s94 = int_to_ptr.vmem [resolvable:$true] %s93
      %96 = dma.hbm_to_vmem [thread:$0]  %s92, 16, %s94, [#allocation13]
    $region37: #{tpu_custom_call.1} parent=1 // pred_fallthru
      _
    // Predicated region
    $region38: #{tpu_custom_call.1} parent=1 // pred_check
      _
    $region39: #{tpu_custom_call.1} parent=1 // pred_check_branch
      %98 = sbr.rel (0) target = $region41
    $region40: #{tpu_custom_call.1} parent=1 // pred_region
      _
    $region41: #{tpu_custom_call.1} parent=1 // pred_fallthru
      _
    // Predicated region
    $region42: #{tpu_custom_call.1} parent=1 // pred_check
      _
    $region43: #{tpu_custom_call.1} parent=1 // pred_check_branch
      %100 = sbr.rel (0) target = $region45
    $region44: #{tpu_custom_call.1} parent=1 // pred_region
      _
    $region45: #{tpu_custom_call.1} parent=1 // pred_fallthru
      _
    // Predicated region
    $region46: #{tpu_custom_call.1} parent=1 // pred_check
      _
    $region47: #{tpu_custom_call.1} parent=1 // pred_check_branch
      %102 = sbr.rel (0) target = $region49
    $region48: #{tpu_custom_call.1} parent=1 // pred_region
      %104 = dma.done [#allocation4], 128
    $region49: #{tpu_custom_call.1} parent=1 // pred_fallthru
      _
    // Predicated region
    $region50: #{tpu_custom_call.1} parent=1 // pred_check
      _
    $region51: #{tpu_custom_call.1} parent=1 // pred_check_branch
      %106 = sbr.rel (0) target = $region53
    $region52: #{tpu_custom_call.1} parent=1 // pred_region
      %108 = dma.done [#allocation7], 16
    $region53: #{tpu_custom_call.1} parent=1 // pred_fallthru
      _
    // Predicated region
    $region54: #{tpu_custom_call.1} parent=1 // pred_check
      _
    $region55: #{tpu_custom_call.1} parent=1 // pred_check_branch
      %110 = sbr.rel (0) target = $region57
    $region56: #{tpu_custom_call.1} parent=1 // pred_region
      %112 = dma.done [#allocation7], 16
    $region57: #{tpu_custom_call.1} parent=1 // pred_fallthru
      _
    // Predicated region
    $region58: #{tpu_custom_call.1} parent=1 // pred_check
      _
    $region59: #{tpu_custom_call.1} parent=1 // pred_check_branch
      %114 = sbr.rel (0) target = $region61
    $region60: #{tpu_custom_call.1} parent=1 // pred_region
      %116 = dma.done [#allocation10], 16
    $region61: #{tpu_custom_call.1} parent=1 // pred_fallthru
      _
    // Predicated region
    $region62: #{tpu_custom_call.1} parent=1 // pred_check
      _
    $region63: #{tpu_custom_call.1} parent=1 // pred_check_branch
      %118 = sbr.rel (0) target = $region65
    $region64: #{tpu_custom_call.1} parent=1 // pred_region
      %120 = dma.done [#allocation10], 256
    $region65: #{tpu_custom_call.1} parent=1 // pred_fallthru
      _
    // Predicated region
    $region66: #{tpu_custom_call.1} parent=1 // pred_check
      _
    $region67: #{tpu_custom_call.1} parent=1 // pred_check_branch
      %122 = sbr.rel (0) target = $region69
    $region68: #{tpu_custom_call.1} parent=1 // pred_region
      %124 = dma.done [#allocation13], 16
    $region69: #{tpu_custom_call.1} parent=1 // pred_fallthru
      _
    %v126 = vld [vmem:[%s0] sm:$0xf]
    %v127 = vld [vmem:[%s0 + $0x4] sm:$0xf]
    %v128 = vld [vmem:[%s0 + $0x8] sm:$0xf]
    %v129 = vld [vmem:[%s0 + $0xc] sm:$0xf]
    %v130 = vld [vmem:[%s0 + $0x10] sm:$0xf]
    %v131 = vld [vmem:[%s0 + $0x14] sm:$0xf]
    %v132 = vld [vmem:[%s0 + $0x18] sm:$0xf]
    %v133 = vld [vmem:[%s0 + $0x1c] sm:$0xf]
    %v134 = vld [vmem:[#allocation3] sm:$0xf]
    %v135 = vld [vmem:[#allocation3 + $0x4] sm:$0xf]
    %v136 = vld [vmem:[#allocation6] sm:$0x1]
    %v138 = vperm.slane %v136, 0
    %v148 = vunpack.c.l.b16 %v126
    %v149 = vunpack.c.l.b16 %v127
    %v150 = vunpack.c.l.b16 %v128
    %v151 = vunpack.c.l.b16 %v129
    %v152 = vunpack.c.l.b16 %v130
    %v153 = vunpack.c.l.b16 %v131
    %v154 = vunpack.c.l.b16 %v132
    %v155 = vunpack.c.l.b16 %v133
    %v156 = vpack.c.b16 %v149, %v148
    %v157 = vpack.c.b16 %v151, %v150
    %v158 = vpack.c.b16 %v153, %v152
    %v159 = vpack.c.b16 %v155, %v154
    %v162 = vunpack.c.l.b16 %v134
    %v163 = vunpack.c.l.b16 %v135
    %v164 = vpack.c.b16 %v163, %v162
    %vm166 = vcmask 130048
    %v168 = vsel %vm166, %v156, 0
    %v171 = vsel %vm166, %v157, 0
    %v174 = vsel %vm166, %v158, 0
    %v177 = vsel %vm166, %v159, 0
    %179 = vmatpush.bf16.msra.mxu0 0
    %180 = vmatpush.bf16.msra.mxu0 0
    %181 = vmatpush.bf16.msra.mxu0 0
    %182 = vmatpush.bf16.msra.mxu0 0
    %183 = vmatpush.bf16.msra.mxu0 0
    %184 = vmatpush.bf16.msra.mxu0 0
    %185 = vmatpush.bf16.msra.mxu0 0
    %186 = vmatpush.bf16.msra.mxu0 %v164
    %187 = vmatmul.bf16.gmra.mxu0 %v168
    %v188 = vpop.f32.mrf.mxu0
    %v189 = vadd.f32 %v138, %v188
    %v190 = vpop.f32.mrf.mxu0
    %v191 = vadd.f32 %v138, %v190
    %192 = vmatmul.bf16.gmra.mxu0 %v171
    %v193 = vpop.f32.mrf.mxu0
    %v194 = vadd.f32 %v138, %v193
    %v195 = vpop.f32.mrf.mxu0
    %v196 = vadd.f32 %v138, %v195
    %197 = vmatmul.bf16.gmra.mxu0 %v174
    %v198 = vpop.f32.mrf.mxu0
    %v199 = vadd.f32 %v138, %v198
    %v200 = vpop.f32.mrf.mxu0
    %v201 = vadd.f32 %v138, %v200
    %202 = vmatmul.bf16.gmra.mxu0 %v177
    %v203 = vpop.f32.mrf.mxu0
    %v204 = vadd.f32 %v138, %v203
    %v205 = vpop.f32.mrf.mxu0
    %v206 = vadd.f32 %v138, %v205
    %207 = vdwg.mxu0
    %208 = vst [vmem:[#allocation2] sm:$0xff] %v189
    %209 = vst [vmem:[#allocation2 + $0x8] sm:$0xff] %v191
    %210 = vst [vmem:[#allocation2 + $0x10] sm:$0xff] %v194
    %211 = vst [vmem:[#allocation2 + $0x18] sm:$0xff] %v196
    %212 = vst [vmem:[#allocation2 + $0x20] sm:$0xff] %v199
    %213 = vst [vmem:[#allocation2 + $0x28] sm:$0xff] %v201
    %214 = vst [vmem:[#allocation2 + $0x30] sm:$0xff] %v204
    %215 = vst [vmem:[#allocation2 + $0x38] sm:$0xff] %v206
    %v216 = vld [vmem:[%s3] sm:$0xf]
    %v217 = vld [vmem:[%s3 + $0x4] sm:$0xf]
    %v218 = vld [vmem:[%s3 + $0x8] sm:$0xf]
    %v219 = vld [vmem:[%s3 + $0xc] sm:$0xf]
    %v220 = vld [vmem:[#allocation8] sm:$0x1]
    %v222 = vperm.slane %v220, 0
    %v224 = vld [vmem:[#allocation11] sm:$0xf]
    %v225 = vld [vmem:[#allocation11 + $0x4] sm:$0xf]
    %v226 = vld [vmem:[#allocation11 + $0x8] sm:$0xf]
    %v227 = vld [vmem:[#allocation11 + $0xc] sm:$0xf]
    %v228 = vld [vmem:[#allocation12] sm:$0x1]
    %v230 = vperm.slane %v228, 0
    %v232 = vld [vmem:[%s5] sm:$0xf]
    %v233 = vld [vmem:[%s5 + $0x4] sm:$0xf]
    %v234 = vld [vmem:[%s5 + $0x8] sm:$0xf]
    %v235 = vld [vmem:[%s5 + $0xc] sm:$0xf]
    %v236 = vld [vmem:[#allocation9] sm:$0x1]
    %v238 = vperm.slane %v236, 0
    %v240 = vld [vmem:[#allocation2] sm:$0xff]
    %v245 = vunpack.c.l.b16 %v216
    %v246 = vunpack.c.l.b16 %v217
    %v247 = vunpack.c.l.b16 %v218
    %v248 = vunpack.c.l.b16 %v219
    %v249 = vpack.c.b16 %v246, %v245
    %v250 = vpack.c.b16 %v248, %v247
    %vm253 = vcmask 261120
    %v255 = vsel %vm253, 0, 0
    %257 = vmatpush.bf16.msra.mxu0 0
    %258 = vmatpush.bf16.msra.mxu0 0
    %259 = vmatpush.bf16.msra.mxu0 0
    %260 = vmatpush.bf16.msra.mxu0 0
    %261 = vmatpush.bf16.msra.mxu0 0
    %262 = vmatpush.bf16.msra.mxu0 0
    %263 = vmatpush.bf16.msra.mxu0 %v250
    %264 = vmatpush.bf16.msra.mxu0 %v249
    %265 = vmatmul.bf16.gmra.mxu0 %v255
    %v266 = vpop.f32.mrf.mxu0
    %v267 = vadd.f32 %v222, %v266
    %v268 = vpop.f32.mrf.mxu0
    %269 = vdwg.mxu0
    %v270 = vadd.f32 %v240, %v267
    %v271 = vxor.u32 %v270, 2147483648
    %v272 = vmul.f32 %v271, 1.442695
    %v273 = vpow.pop %v272
    %v274 = vadd.f32 %v273, 1.0
    %v275 = vrcp.pop %v274
    %v276 = vmul.f32 %v274, %v275
    %v277 = vsub.f32 1.0, %v276
    %v278 = vmul.f32 %v275, %v277
    %v279 = vadd.f32 %v275, %v278
    %vm280 = vweird.f32 %v274
    %vm281 = vweird.f32 %v275
    %vm282 = vmor %vm280, %vm281
    %v283 = vsel %vm282, %v275, %v279
    %v284 = vand.u32 2147483647, %v274
    %vm285 = vcmp.eq.f32.partialorder %v284, 8.507059e+37
    %v286 = vand.u32 %v274, 2147483648
    %v287 = vor.u32 1.1754944e-38, %v286
    %v288 = vsel %vm285, %v287, %v283
    %v289 = vmul.f32 1.0, %v288
    %291 = vrot.lane.b32.xlu0 %v267, 64
    %v292 = vpop.permute.xlu0 %291
    %v294 = vmul.f32 %v289, %v292
    %296 = vrot.lane.b32.xlu0 %v294, 64
    %v297 = vpop.permute.xlu0 %296
    %v299 = vadd.f32 %v240, %v297
    %v300 = vtanh.pop %v299
    %v301 = vsub.f32 1.0, %v289
    %303 = vrot.lane.b32.xlu0 %v300, 96
    %v304 = vpop.permute.xlu0 %303
    %v306 = vmul.f32 %v301, %v304
    %v307 = vmul.f32 %v289, 0.0
    %v308 = vadd.f32 %v306, %v307
    %v309 = vpack.c.bf16 %v308, %v308
    %311 = vrot.lane.b32.xlu0 %v309, 96
    %v312 = vpop.permute.xlu0 %311
    %v317 = vunpack.c.l.b16 %v232
    %v318 = vunpack.c.l.b16 %v233
    %v319 = vunpack.c.l.b16 %v234
    %v320 = vunpack.c.l.b16 %v235
    %v321 = vpack.c.b16 %v318, %v317
    %v322 = vpack.c.b16 %v320, %v319
    %v326 = vsel %vm253, %v312, 0
    %328 = vmatpush.bf16.msra.mxu0 0
    %329 = vmatpush.bf16.msra.mxu0 0
    %330 = vmatpush.bf16.msra.mxu0 0
    %331 = vmatpush.bf16.msra.mxu0 0
    %332 = vmatpush.bf16.msra.mxu0 0
    %333 = vmatpush.bf16.msra.mxu0 0
    %334 = vmatpush.bf16.msra.mxu0 %v322
    %335 = vmatpush.bf16.msra.mxu0 %v321
    %336 = vmatmul.bf16.gmra.mxu0 %v326
    %v337 = vpop.f32.mrf.mxu0
    %v338 = vadd.f32 %v238, %v337
    %v339 = vpop.f32.mrf.mxu0
    %340 = vdwg.mxu0
    %v345 = vunpack.c.l.b16 %v224
    %v346 = vunpack.c.l.b16 %v225
    %v347 = vunpack.c.l.b16 %v226
    %v348 = vunpack.c.l.b16 %v227
    %v349 = vpack.c.b16 %v346, %v345
    %v350 = vpack.c.b16 %v348, %v347
    %353 = vmatpush.bf16.msra.mxu0 0
    %354 = vmatpush.bf16.msra.mxu0 0
    %355 = vmatpush.bf16.msra.mxu0 0
    %356 = vmatpush.bf16.msra.mxu0 0
    %357 = vmatpush.bf16.msra.mxu0 0
    %358 = vmatpush.bf16.msra.mxu0 0
    %359 = vmatpush.bf16.msra.mxu0 %v350
    %360 = vmatpush.bf16.msra.mxu0 %v349
    %361 = vmatmul.bf16.gmra.mxu0 %v255
    %v362 = vpop.f32.mrf.mxu0
    %v363 = vadd.f32 %v230, %v362
    %v364 = vpop.f32.mrf.mxu0
    %365 = vdwg.mxu0
    %v366 = vadd.f32 %v338, %v363
    %v367 = vxor.u32 %v366, 2147483648
    %v368 = vmul.f32 %v367, 1.442695
    %v369 = vpow.pop %v368
    %v370 = vadd.f32 %v369, 1.0
    %v371 = vrcp.pop %v370
    %v372 = vmul.f32 %v370, %v371
    %v373 = vsub.f32 1.0, %v372
    %v374 = vmul.f32 %v371, %v373
    %v375 = vadd.f32 %v371, %v374
    %vm376 = vweird.f32 %v370
    %vm377 = vweird.f32 %v371
    %vm378 = vmor %vm376, %vm377
    %v379 = vsel %vm378, %v371, %v375
    %v380 = vand.u32 2147483647, %v370
    %vm381 = vcmp.eq.f32.partialorder %v380, 8.507059e+37
    %v382 = vand.u32 %v370, 2147483648
    %v383 = vor.u32 1.1754944e-38, %v382
    %v384 = vsel %vm381, %v383, %v379
    %v385 = vmul.f32 1.0, %v384
    %387 = vrot.lane.b32.xlu0 %v363, 64
    %v388 = vpop.permute.xlu0 %387
    %v390 = vmul.f32 %v385, %v388
    %392 = vrot.lane.b32.xlu0 %v390, 64
    %v393 = vpop.permute.xlu0 %392
    %v395 = vadd.f32 %v338, %v393
    %v396 = vtanh.pop %v395
    %v397 = vsub.f32 1.0, %v385
    %399 = vrot.lane.b32.xlu0 %v396, 96
    %v400 = vpop.permute.xlu0 %399
    %v402 = vmul.f32 %v397, %v400
    %v403 = vmul.f32 %v385, 0.0
    %v404 = vadd.f32 %v402, %v403
    %s405 = scalar_lea.vmem [#allocation2], 8
    %v406 = vld [vmem:[%s405] sm:$0xff]
    %407 = vmatpush.bf16.msra.mxu0 0
    %408 = vmatpush.bf16.msra.mxu0 0
    %409 = vmatpush.bf16.msra.mxu0 0
    %410 = vmatpush.bf16.msra.mxu0 0
    %411 = vmatpush.bf16.msra.mxu0 0
    %412 = vmatpush.bf16.msra.mxu0 0
    %413 = vmatpush.bf16.msra.mxu0 %v250
    %414 = vmatpush.bf16.msra.mxu0 %v249
    %415 = vmatmul.bf16.gmra.mxu0 %v326
    %v416 = vpop.f32.mrf.mxu0
    %v417 = vadd.f32 %v222, %v416
    %v418 = vpop.f32.mrf.mxu0
    %419 = vdwg.mxu0
    %v420 = vadd.f32 %v406, %v417
    %v421 = vxor.u32 %v420, 2147483648
    %v422 = vmul.f32 %v421, 1.442695
    %v423 = vpow.pop %v422
    %v424 = vadd.f32 %v423, 1.0
    %v425 = vrcp.pop %v424
    %v426 = vmul.f32 %v424, %v425
    %v427 = vsub.f32 1.0, %v426
    %v428 = vmul.f32 %v425, %v427
    %v429 = vadd.f32 %v425, %v428
    %vm430 = vweird.f32 %v424
    %vm431 = vweird.f32 %v425
    %vm432 = vmor %vm430, %vm431
    %v433 = vsel %vm432, %v425, %v429
    %v434 = vand.u32 2147483647, %v424
    %vm435 = vcmp.eq.f32.partialorder %v434, 8.507059e+37
    %v436 = vand.u32 %v424, 2147483648
    %v437 = vor.u32 1.1754944e-38, %v436
    %v438 = vsel %vm435, %v437, %v433
    %v439 = vmul.f32 1.0, %v438
    %441 = vrot.lane.b32.xlu0 %v417, 64
    %v442 = vpop.permute.xlu0 %441
    %v444 = vmul.f32 %v439, %v442
    %446 = vrot.lane.b32.xlu0 %v444, 64
    %v447 = vpop.permute.xlu0 %446
    %v449 = vadd.f32 %v406, %v447
    %v450 = vtanh.pop %v449
    %v451 = vsub.f32 1.0, %v439
    %453 = vrot.lane.b32.xlu0 %v450, 96
    %v454 = vpop.permute.xlu0 %453
    %v456 = vmul.f32 %v451, %v454
    %v457 = vmul.f32 %v439, %v308
    %v458 = vadd.f32 %v456, %v457
    %v459 = vpack.c.bf16 %v458, %v458
    %461 = vrot.lane.b32.xlu0 %v459, 96
    %v462 = vpop.permute.xlu0 %461
    %v464 = vsel %vm253, %v462, 0
    %466 = vmatpush.bf16.msra.mxu0 0
    %467 = vmatpush.bf16.msra.mxu0 0
    %468 = vmatpush.bf16.msra.mxu0 0
    %469 = vmatpush.bf16.msra.mxu0 0
    %470 = vmatpush.bf16.msra.mxu0 0
    %471 = vmatpush.bf16.msra.mxu0 0
    %472 = vmatpush.bf16.msra.mxu0 %v322
    %473 = vmatpush.bf16.msra.mxu0 %v321
    %474 = vmatmul.bf16.gmra.mxu0 %v464
    %v475 = vpop.f32.mrf.mxu0
    %v476 = vadd.f32 %v238, %v475
    %v477 = vpop.f32.mrf.mxu0
    %478 = vdwg.mxu0
    %v479 = vpack.c.bf16 %v404, %v404
    %481 = vrot.lane.b32.xlu0 %v479, 96
    %v482 = vpop.permute.xlu0 %481
    %v484 = vsel %vm253, %v482, 0
    %486 = vmatpush.bf16.msra.mxu0 0
    %487 = vmatpush.bf16.msra.mxu0 0
    %488 = vmatpush.bf16.msra.mxu0 0
    %489 = vmatpush.bf16.msra.mxu0 0
    %490 = vmatpush.bf16.msra.mxu0 0
    %491 = vmatpush.bf16.msra.mxu0 0
    %492 = vmatpush.bf16.msra.mxu0 %v350
    %493 = vmatpush.bf16.msra.mxu0 %v349
    %494 = vmatmul.bf16.gmra.mxu0 %v484
    %v495 = vpop.f32.mrf.mxu0
    %v496 = vadd.f32 %v230, %v495
    %v497 = vpop.f32.mrf.mxu0
    %498 = vdwg.mxu0
    %v499 = vadd.f32 %v476, %v496
    %v500 = vxor.u32 %v499, 2147483648
    %v501 = vmul.f32 %v500, 1.442695
    %v502 = vpow.pop %v501
    %v503 = vadd.f32 %v502, 1.0
    %v504 = vrcp.pop %v503
    %v505 = vmul.f32 %v503, %v504
    %v506 = vsub.f32 1.0, %v505
    %v507 = vmul.f32 %v504, %v506
    %v508 = vadd.f32 %v504, %v507
    %vm509 = vweird.f32 %v503
    %vm510 = vweird.f32 %v504
    %vm511 = vmor %vm509, %vm510
    %v512 = vsel %vm511, %v504, %v508
    %v513 = vand.u32 2147483647, %v503
    %vm514 = vcmp.eq.f32.partialorder %v513, 8.507059e+37
    %v515 = vand.u32 %v503, 2147483648
    %v516 = vor.u32 1.1754944e-38, %v515
    %v517 = vsel %vm514, %v516, %v512
    %v518 = vmul.f32 1.0, %v517
    %520 = vrot.lane.b32.xlu0 %v496, 64
    %v521 = vpop.permute.xlu0 %520
    %v523 = vmul.f32 %v518, %v521
    %525 = vrot.lane.b32.xlu0 %v523, 64
    %v526 = vpop.permute.xlu0 %525
    %v528 = vadd.f32 %v476, %v526
    %v529 = vtanh.pop %v528
    %v530 = vsub.f32 1.0, %v518
    %532 = vrot.lane.b32.xlu0 %v529, 96
    %v533 = vpop.permute.xlu0 %532
    %v535 = vmul.f32 %v530, %v533
    %v536 = vmul.f32 %v518, %v404
    %v537 = vadd.f32 %v535, %v536
    %s538 = scalar_lea.vmem [#allocation2], 16
    %v539 = vld [vmem:[%s538] sm:$0xff]
    %540 = vmatpush.bf16.msra.mxu0 0
    %541 = vmatpush.bf16.msra.mxu0 0
    %542 = vmatpush.bf16.msra.mxu0 0
    %543 = vmatpush.bf16.msra.mxu0 0
    %544 = vmatpush.bf16.msra.mxu0 0
    %545 = vmatpush.bf16.msra.mxu0 0
    %546 = vmatpush.bf16.msra.mxu0 %v250
    %547 = vmatpush.bf16.msra.mxu0 %v249
    %548 = vmatmul.bf16.gmra.mxu0 %v464
    %v549 = vpop.f32.mrf.mxu0
    %v550 = vadd.f32 %v222, %v549
    %v551 = vpop.f32.mrf.mxu0
    %552 = vdwg.mxu0
    %v553 = vadd.f32 %v539, %v550
    %v554 = vxor.u32 %v553, 2147483648
    %v555 = vmul.f32 %v554, 1.442695
    %v556 = vpow.pop %v555
    %v557 = vadd.f32 %v556, 1.0
    %v558 = vrcp.pop %v557
    %v559 = vmul.f32 %v557, %v558
    %v560 = vsub.f32 1.0, %v559
    %v561 = vmul.f32 %v558, %v560
    %v562 = vadd.f32 %v558, %v561
    %vm563 = vweird.f32 %v557
    %vm564 = vweird.f32 %v558
    %vm565 = vmor %vm563, %vm564
    %v566 = vsel %vm565, %v558, %v562
    %v567 = vand.u32 2147483647, %v557
    %vm568 = vcmp.eq.f32.partialorder %v567, 8.507059e+37
    %v569 = vand.u32 %v557, 2147483648
    %v570 = vor.u32 1.1754944e-38, %v569
    %v571 = vsel %vm568, %v570, %v566
    %v572 = vmul.f32 1.0, %v571
    %574 = vrot.lane.b32.xlu0 %v550, 64
    %v575 = vpop.permute.xlu0 %574
    %v577 = vmul.f32 %v572, %v575
    %579 = vrot.lane.b32.xlu0 %v577, 64
    %v580 = vpop.permute.xlu0 %579
    %v582 = vadd.f32 %v539, %v580
    %v583 = vtanh.pop %v582
    %v584 = vsub.f32 1.0, %v572
    %586 = vrot.lane.b32.xlu0 %v583, 96
    %v587 = vpop.permute.xlu0 %586
    %v589 = vmul.f32 %v584, %v587
    %v590 = vmul.f32 %v572, %v458
    %v591 = vadd.f32 %v589, %v590
    %v592 = vpack.c.bf16 %v591, %v591
    %594 = vrot.lane.b32.xlu0 %v592, 96
    %v595 = vpop.permute.xlu0 %594
    %v597 = vsel %vm253, %v595, 0
    %599 = vmatpush.bf16.msra.mxu0 0
    %600 = vmatpush.bf16.msra.mxu0 0
    %601 = vmatpush.bf16.msra.mxu0 0
    %602 = vmatpush.bf16.msra.mxu0 0
    %603 = vmatpush.bf16.msra.mxu0 0
    %604 = vmatpush.bf16.msra.mxu0 0
    %605 = vmatpush.bf16.msra.mxu0 %v322
    %606 = vmatpush.bf16.msra.mxu0 %v321
    %607 = vmatmul.bf16.gmra.mxu0 %v597
    %v608 = vpop.f32.mrf.mxu0
    %v609 = vadd.f32 %v238, %v608
    %v610 = vpop.f32.mrf.mxu0
    %611 = vdwg.mxu0
    %v612 = vpack.c.bf16 %v537, %v537
    %614 = vrot.lane.b32.xlu0 %v612, 96
    %v615 = vpop.permute.xlu0 %614
    %v617 = vsel %vm253, %v615, 0
    %619 = vmatpush.bf16.msra.mxu0 0
    %620 = vmatpush.bf16.msra.mxu0 0
    %621 = vmatpush.bf16.msra.mxu0 0
    %622 = vmatpush.bf16.msra.mxu0 0
    %623 = vmatpush.bf16.msra.mxu0 0
    %624 = vmatpush.bf16.msra.mxu0 0
    %625 = vmatpush.bf16.msra.mxu0 %v350
    %626 = vmatpush.bf16.msra.mxu0 %v349
    %627 = vmatmul.bf16.gmra.mxu0 %v617
    %v628 = vpop.f32.mrf.mxu0
    %v629 = vadd.f32 %v230, %v628
    %v630 = vpop.f32.mrf.mxu0
    %631 = vdwg.mxu0
    %v632 = vadd.f32 %v609, %v629
    %v633 = vxor.u32 %v632, 2147483648
    %v634 = vmul.f32 %v633, 1.442695
    %v635 = vpow.pop %v634
    %v636 = vadd.f32 %v635, 1.0
    %v637 = vrcp.pop %v636
    %v638 = vmul.f32 %v636, %v637
    %v639 = vsub.f32 1.0, %v638
    %v640 = vmul.f32 %v637, %v639
    %v641 = vadd.f32 %v637, %v640
    %vm642 = vweird.f32 %v636
    %vm643 = vweird.f32 %v637
    %vm644 = vmor %vm642, %vm643
    %v645 = vsel %vm644, %v637, %v641
    %v646 = vand.u32 2147483647, %v636
    %vm647 = vcmp.eq.f32.partialorder %v646, 8.507059e+37
    %v648 = vand.u32 %v636, 2147483648
    %v649 = vor.u32 1.1754944e-38, %v648
    %v650 = vsel %vm647, %v649, %v645
    %v651 = vmul.f32 1.0, %v650
    %653 = vrot.lane.b32.xlu0 %v629, 64
    %v654 = vpop.permute.xlu0 %653
    %v656 = vmul.f32 %v651, %v654
    %658 = vrot.lane.b32.xlu0 %v656, 64
    %v659 = vpop.permute.xlu0 %658
    %v661 = vadd.f32 %v609, %v659
    %v662 = vtanh.pop %v661
    %v663 = vsub.f32 1.0, %v651
    %665 = vrot.lane.b32.xlu0 %v662, 96
    %v666 = vpop.permute.xlu0 %665
    %v668 = vmul.f32 %v663, %v666
    %v669 = vmul.f32 %v651, %v537
    %v670 = vadd.f32 %v668, %v669
    %s671 = scalar_lea.vmem [#allocation2], 24
    %v672 = vld [vmem:[%s671] sm:$0xff]
    %673 = vmatpush.bf16.msra.mxu0 0
    %674 = vmatpush.bf16.msra.mxu0 0
    %675 = vmatpush.bf16.msra.mxu0 0
    %676 = vmatpush.bf16.msra.mxu0 0
    %677 = vmatpush.bf16.msra.mxu0 0
    %678 = vmatpush.bf16.msra.mxu0 0
    %679 = vmatpush.bf16.msra.mxu0 %v250
    %680 = vmatpush.bf16.msra.mxu0 %v249
    %681 = vmatmul.bf16.gmra.mxu0 %v597
    %v682 = vpop.f32.mrf.mxu0
    %v683 = vadd.f32 %v222, %v682
    %v684 = vpop.f32.mrf.mxu0
    %685 = vdwg.mxu0
    %v686 = vadd.f32 %v672, %v683
    %v687 = vxor.u32 %v686, 2147483648
    %v688 = vmul.f32 %v687, 1.442695
    %v689 = vpow.pop %v688
    %v690 = vadd.f32 %v689, 1.0
    %v691 = vrcp.pop %v690
    %v692 = vmul.f32 %v690, %v691
    %v693 = vsub.f32 1.0, %v692
    %v694 = vmul.f32 %v691, %v693
    %v695 = vadd.f32 %v691, %v694
    %vm696 = vweird.f32 %v690
    %vm697 = vweird.f32 %v691
    %vm698 = vmor %vm696, %vm697
    %v699 = vsel %vm698, %v691, %v695
    %v700 = vand.u32 2147483647, %v690
    %vm701 = vcmp.eq.f32.partialorder %v700, 8.507059e+37
    %v702 = vand.u32 %v690, 2147483648
    %v703 = vor.u32 1.1754944e-38, %v702
    %v704 = vsel %vm701, %v703, %v699
    %v705 = vmul.f32 1.0, %v704
    %707 = vrot.lane.b32.xlu0 %v683, 64
    %v708 = vpop.permute.xlu0 %707
    %v710 = vmul.f32 %v705, %v708
    %712 = vrot.lane.b32.xlu0 %v710, 64
    %v713 = vpop.permute.xlu0 %712
    %v715 = vadd.f32 %v672, %v713
    %v716 = vtanh.pop %v715
    %v717 = vsub.f32 1.0, %v705
    %719 = vrot.lane.b32.xlu0 %v716, 96
    %v720 = vpop.permute.xlu0 %719
    %v722 = vmul.f32 %v717, %v720
    %v723 = vmul.f32 %v705, %v591
    %v724 = vadd.f32 %v722, %v723
    %v725 = vpack.c.bf16 %v724, %v724
    %727 = vrot.lane.b32.xlu0 %v725, 96
    %v728 = vpop.permute.xlu0 %727
    %v730 = vsel %vm253, %v728, 0
    %732 = vmatpush.bf16.msra.mxu0 0
    %733 = vmatpush.bf16.msra.mxu0 0
    %734 = vmatpush.bf16.msra.mxu0 0
    %735 = vmatpush.bf16.msra.mxu0 0
    %736 = vmatpush.bf16.msra.mxu0 0
    %737 = vmatpush.bf16.msra.mxu0 0
    %738 = vmatpush.bf16.msra.mxu0 %v322
    %739 = vmatpush.bf16.msra.mxu0 %v321
    %740 = vmatmul.bf16.gmra.mxu0 %v730
    %v741 = vpop.f32.mrf.mxu0
    %v742 = vadd.f32 %v238, %v741
    %v743 = vpop.f32.mrf.mxu0
    %744 = vdwg.mxu0
    %v745 = vpack.c.bf16 %v670, %v670
    %747 = vrot.lane.b32.xlu0 %v745, 96
    %v748 = vpop.permute.xlu0 %747
    %v750 = vsel %vm253, %v748, 0
    %752 = vmatpush.bf16.msra.mxu0 0
    %753 = vmatpush.bf16.msra.mxu0 0
    %754 = vmatpush.bf16.msra.mxu0 0
    %755 = vmatpush.bf16.msra.mxu0 0
    %756 = vmatpush.bf16.msra.mxu0 0
    %757 = vmatpush.bf16.msra.mxu0 0
    %758 = vmatpush.bf16.msra.mxu0 %v350
    %759 = vmatpush.bf16.msra.mxu0 %v349
    %760 = vmatmul.bf16.gmra.mxu0 %v750
    %v761 = vpop.f32.mrf.mxu0
    %v762 = vadd.f32 %v230, %v761
    %v763 = vpop.f32.mrf.mxu0
    %764 = vdwg.mxu0
    %v765 = vadd.f32 %v742, %v762
    %v766 = vxor.u32 %v765, 2147483648
    %v767 = vmul.f32 %v766, 1.442695
    %v768 = vpow.pop %v767
    %v769 = vadd.f32 %v768, 1.0
    %v770 = vrcp.pop %v769
    %v771 = vmul.f32 %v769, %v770
    %v772 = vsub.f32 1.0, %v771
    %v773 = vmul.f32 %v770, %v772
    %v774 = vadd.f32 %v770, %v773
    %vm775 = vweird.f32 %v769
    %vm776 = vweird.f32 %v770
    %vm777 = vmor %vm775, %vm776
    %v778 = vsel %vm777, %v770, %v774
    %v779 = vand.u32 2147483647, %v769
    %vm780 = vcmp.eq.f32.partialorder %v779, 8.507059e+37
    %v781 = vand.u32 %v769, 2147483648
    %v782 = vor.u32 1.1754944e-38, %v781
    %v783 = vsel %vm780, %v782, %v778
    %v784 = vmul.f32 1.0, %v783
    %786 = vrot.lane.b32.xlu0 %v762, 64
    %v787 = vpop.permute.xlu0 %786
    %v789 = vmul.f32 %v784, %v787
    %791 = vrot.lane.b32.xlu0 %v789, 64
    %v792 = vpop.permute.xlu0 %791
    %v794 = vadd.f32 %v742, %v792
    %v795 = vtanh.pop %v794
    %v796 = vsub.f32 1.0, %v784
    %798 = vrot.lane.b32.xlu0 %v795, 96
    %v799 = vpop.permute.xlu0 %798
    %v801 = vmul.f32 %v796, %v799
    %v802 = vmul.f32 %v784, %v670
    %v803 = vadd.f32 %v801, %v802
    %s804 = scalar_lea.vmem [#allocation2], 32
    %v805 = vld [vmem:[%s804] sm:$0xff]
    %806 = vmatpush.bf16.msra.mxu0 0
    %807 = vmatpush.bf16.msra.mxu0 0
    %808 = vmatpush.bf16.msra.mxu0 0
    %809 = vmatpush.bf16.msra.mxu0 0
    %810 = vmatpush.bf16.msra.mxu0 0
    %811 = vmatpush.bf16.msra.mxu0 0
    %812 = vmatpush.bf16.msra.mxu0 %v250
    %813 = vmatpush.bf16.msra.mxu0 %v249
    %814 = vmatmul.bf16.gmra.mxu0 %v730
    %v815 = vpop.f32.mrf.mxu0
    %v816 = vadd.f32 %v222, %v815
    %v817 = vpop.f32.mrf.mxu0
    %818 = vdwg.mxu0
    %v819 = vadd.f32 %v805, %v816
    %v820 = vxor.u32 %v819, 2147483648
    %v821 = vmul.f32 %v820, 1.442695
    %v822 = vpow.pop %v821
    %v823 = vadd.f32 %v822, 1.0
    %v824 = vrcp.pop %v823
    %v825 = vmul.f32 %v823, %v824
    %v826 = vsub.f32 1.0, %v825
    %v827 = vmul.f32 %v824, %v826
    %v828 = vadd.f32 %v824, %v827
    %vm829 = vweird.f32 %v823
    %vm830 = vweird.f32 %v824
    %vm831 = vmor %vm829, %vm830
    %v832 = vsel %vm831, %v824, %v828
    %v833 = vand.u32 2147483647, %v823
    %vm834 = vcmp.eq.f32.partialorder %v833, 8.507059e+37
    %v835 = vand.u32 %v823, 2147483648
    %v836 = vor.u32 1.1754944e-38, %v835
    %v837 = vsel %vm834, %v836, %v832
    %v838 = vmul.f32 1.0, %v837
    %840 = vrot.lane.b32.xlu0 %v816, 64
    %v841 = vpop.permute.xlu0 %840
    %v843 = vmul.f32 %v838, %v841
    %845 = vrot.lane.b32.xlu0 %v843, 64
    %v846 = vpop.permute.xlu0 %845
    %v848 = vadd.f32 %v805, %v846
    %v849 = vtanh.pop %v848
    %v850 = vsub.f32 1.0, %v838
    %852 = vrot.lane.b32.xlu0 %v849, 96
    %v853 = vpop.permute.xlu0 %852
    %v855 = vmul.f32 %v850, %v853
    %v856 = vmul.f32 %v838, %v724
    %v857 = vadd.f32 %v855, %v856
    %v858 = vpack.c.bf16 %v857, %v857
    %860 = vrot.lane.b32.xlu0 %v858, 96
    %v861 = vpop.permute.xlu0 %860
    %v863 = vsel %vm253, %v861, 0
    %865 = vmatpush.bf16.msra.mxu0 0
    %866 = vmatpush.bf16.msra.mxu0 0
    %867 = vmatpush.bf16.msra.mxu0 0
    %868 = vmatpush.bf16.msra.mxu0 0
    %869 = vmatpush.bf16.msra.mxu0 0
    %870 = vmatpush.bf16.msra.mxu0 0
    %871 = vmatpush.bf16.msra.mxu0 %v322
    %872 = vmatpush.bf16.msra.mxu0 %v321
    %873 = vmatmul.bf16.gmra.mxu0 %v863
    %v874 = vpop.f32.mrf.mxu0
    %v875 = vadd.f32 %v238, %v874
    %v876 = vpop.f32.mrf.mxu0
    %877 = vdwg.mxu0
    %v878 = vpack.c.bf16 %v803, %v803
    %880 = vrot.lane.b32.xlu0 %v878, 96
    %v881 = vpop.permute.xlu0 %880
    %v883 = vsel %vm253, %v881, 0
    %885 = vmatpush.bf16.msra.mxu0 0
    %886 = vmatpush.bf16.msra.mxu0 0
    %887 = vmatpush.bf16.msra.mxu0 0
    %888 = vmatpush.bf16.msra.mxu0 0
    %889 = vmatpush.bf16.msra.mxu0 0
    %890 = vmatpush.bf16.msra.mxu0 0
    %891 = vmatpush.bf16.msra.mxu0 %v350
    %892 = vmatpush.bf16.msra.mxu0 %v349
    %893 = vmatmul.bf16.gmra.mxu0 %v883
    %v894 = vpop.f32.mrf.mxu0
    %v895 = vadd.f32 %v230, %v894
    %v896 = vpop.f32.mrf.mxu0
    %897 = vdwg.mxu0
    %v898 = vadd.f32 %v875, %v895
    %v899 = vxor.u32 %v898, 2147483648
    %v900 = vmul.f32 %v899, 1.442695
    %v901 = vpow.pop %v900
    %v902 = vadd.f32 %v901, 1.0
    %v903 = vrcp.pop %v902
    %v904 = vmul.f32 %v902, %v903
    %v905 = vsub.f32 1.0, %v904
    %v906 = vmul.f32 %v903, %v905
    %v907 = vadd.f32 %v903, %v906
    %vm908 = vweird.f32 %v902
    %vm909 = vweird.f32 %v903
    %vm910 = vmor %vm908, %vm909
    %v911 = vsel %vm910, %v903, %v907
    %v912 = vand.u32 2147483647, %v902
    %vm913 = vcmp.eq.f32.partialorder %v912, 8.507059e+37
    %v914 = vand.u32 %v902, 2147483648
    %v915 = vor.u32 1.1754944e-38, %v914
    %v916 = vsel %vm913, %v915, %v911
    %v917 = vmul.f32 1.0, %v916
    %919 = vrot.lane.b32.xlu0 %v895, 64
    %v920 = vpop.permute.xlu0 %919
    %v922 = vmul.f32 %v917, %v920
    %924 = vrot.lane.b32.xlu0 %v922, 64
    %v925 = vpop.permute.xlu0 %924
    %v927 = vadd.f32 %v875, %v925
    %v928 = vtanh.pop %v927
    %v929 = vsub.f32 1.0, %v917
    %931 = vrot.lane.b32.xlu0 %v928, 96
    %v932 = vpop.permute.xlu0 %931
    %v934 = vmul.f32 %v929, %v932
    %v935 = vmul.f32 %v917, %v803
    %v936 = vadd.f32 %v934, %v935
    %s937 = scalar_lea.vmem [#allocation2], 40
    %v938 = vld [vmem:[%s937] sm:$0xff]
    %939 = vmatpush.bf16.msra.mxu0 0
    %940 = vmatpush.bf16.msra.mxu0 0
    %941 = vmatpush.bf16.msra.mxu0 0
    %942 = vmatpush.bf16.msra.mxu0 0
    %943 = vmatpush.bf16.msra.mxu0 0
    %944 = vmatpush.bf16.msra.mxu0 0
    %945 = vmatpush.bf16.msra.mxu0 %v250
    %946 = vmatpush.bf16.msra.mxu0 %v249
    %947 = vmatmul.bf16.gmra.mxu0 %v863
    %v948 = vpop.f32.mrf.mxu0
    %v949 = vadd.f32 %v222, %v948
    %v950 = vpop.f32.mrf.mxu0
    %951 = vdwg.mxu0
    %v952 = vadd.f32 %v938, %v949
    %v953 = vxor.u32 %v952, 2147483648
    %v954 = vmul.f32 %v953, 1.442695
    %v955 = vpow.pop %v954
    %v956 = vadd.f32 %v955, 1.0
    %v957 = vrcp.pop %v956
    %v958 = vmul.f32 %v956, %v957
    %v959 = vsub.f32 1.0, %v958
    %v960 = vmul.f32 %v957, %v959
    %v961 = vadd.f32 %v957, %v960
    %vm962 = vweird.f32 %v956
    %vm963 = vweird.f32 %v957
    %vm964 = vmor %vm962, %vm963
    %v965 = vsel %vm964, %v957, %v961
    %v966 = vand.u32 2147483647, %v956
    %vm967 = vcmp.eq.f32.partialorder %v966, 8.507059e+37
    %v968 = vand.u32 %v956, 2147483648
    %v969 = vor.u32 1.1754944e-38, %v968
    %v970 = vsel %vm967, %v969, %v965
    %v971 = vmul.f32 1.0, %v970
    %973 = vrot.lane.b32.xlu0 %v949, 64
    %v974 = vpop.permute.xlu0 %973
    %v976 = vmul.f32 %v971, %v974
    %978 = vrot.lane.b32.xlu0 %v976, 64
    %v979 = vpop.permute.xlu0 %978
    %v981 = vadd.f32 %v938, %v979
    %v982 = vtanh.pop %v981
    %v983 = vsub.f32 1.0, %v971
    %985 = vrot.lane.b32.xlu0 %v982, 96
    %v986 = vpop.permute.xlu0 %985
    %v988 = vmul.f32 %v983, %v986
    %v989 = vmul.f32 %v971, %v857
    %v990 = vadd.f32 %v988, %v989
    %v991 = vpack.c.bf16 %v990, %v990
    %993 = vrot.lane.b32.xlu0 %v991, 96
    %v994 = vpop.permute.xlu0 %993
    %v996 = vsel %vm253, %v994, 0
    %998 = vmatpush.bf16.msra.mxu0 0
    %999 = vmatpush.bf16.msra.mxu0 0
    %1000 = vmatpush.bf16.msra.mxu0 0
    %1001 = vmatpush.bf16.msra.mxu0 0
    %1002 = vmatpush.bf16.msra.mxu0 0
    %1003 = vmatpush.bf16.msra.mxu0 0
    %1004 = vmatpush.bf16.msra.mxu0 %v322
    %1005 = vmatpush.bf16.msra.mxu0 %v321
    %1006 = vmatmul.bf16.gmra.mxu0 %v996
    %v1007 = vpop.f32.mrf.mxu0
    %v1008 = vadd.f32 %v238, %v1007
    %v1009 = vpop.f32.mrf.mxu0
    %1010 = vdwg.mxu0
    %v1011 = vpack.c.bf16 %v936, %v936
    %1013 = vrot.lane.b32.xlu0 %v1011, 96
    %v1014 = vpop.permute.xlu0 %1013
    %v1016 = vsel %vm253, %v1014, 0
    %1018 = vmatpush.bf16.msra.mxu0 0
    %1019 = vmatpush.bf16.msra.mxu0 0
    %1020 = vmatpush.bf16.msra.mxu0 0
    %1021 = vmatpush.bf16.msra.mxu0 0
    %1022 = vmatpush.bf16.msra.mxu0 0
    %1023 = vmatpush.bf16.msra.mxu0 0
    %1024 = vmatpush.bf16.msra.mxu0 %v350
    %1025 = vmatpush.bf16.msra.mxu0 %v349
    %1026 = vmatmul.bf16.gmra.mxu0 %v1016
    %v1027 = vpop.f32.mrf.mxu0
    %v1028 = vadd.f32 %v230, %v1027
    %v1029 = vpop.f32.mrf.mxu0
    %1030 = vdwg.mxu0
    %v1031 = vadd.f32 %v1008, %v1028
    %v1032 = vxor.u32 %v1031, 2147483648
    %v1033 = vmul.f32 %v1032, 1.442695
    %v1034 = vpow.pop %v1033
    %v1035 = vadd.f32 %v1034, 1.0
    %v1036 = vrcp.pop %v1035
    %v1037 = vmul.f32 %v1035, %v1036
    %v1038 = vsub.f32 1.0, %v1037
    %v1039 = vmul.f32 %v1036, %v1038
    %v1040 = vadd.f32 %v1036, %v1039
    %vm1041 = vweird.f32 %v1035
    %vm1042 = vweird.f32 %v1036
    %vm1043 = vmor %vm1041, %vm1042
    %v1044 = vsel %vm1043, %v1036, %v1040
    %v1045 = vand.u32 2147483647, %v1035
    %vm1046 = vcmp.eq.f32.partialorder %v1045, 8.507059e+37
    %v1047 = vand.u32 %v1035, 2147483648
    %v1048 = vor.u32 1.1754944e-38, %v1047
    %v1049 = vsel %vm1046, %v1048, %v1044
    %v1050 = vmul.f32 1.0, %v1049
    %1052 = vrot.lane.b32.xlu0 %v1028, 64
    %v1053 = vpop.permute.xlu0 %1052
    %v1055 = vmul.f32 %v1050, %v1053
    %1057 = vrot.lane.b32.xlu0 %v1055, 64
    %v1058 = vpop.permute.xlu0 %1057
    %v1060 = vadd.f32 %v1008, %v1058
    %v1061 = vtanh.pop %v1060
    %v1062 = vsub.f32 1.0, %v1050
    %1064 = vrot.lane.b32.xlu0 %v1061, 96
    %v1065 = vpop.permute.xlu0 %1064
    %v1067 = vmul.f32 %v1062, %v1065
    %v1068 = vmul.f32 %v1050, %v936
    %v1069 = vadd.f32 %v1067, %v1068
    %s1070 = scalar_lea.vmem [#allocation2], 48
    %v1071 = vld [vmem:[%s1070] sm:$0xff]
    %1072 = vmatpush.bf16.msra.mxu0 0
    %1073 = vmatpush.bf16.msra.mxu0 0
    %1074 = vmatpush.bf16.msra.mxu0 0
    %1075 = vmatpush.bf16.msra.mxu0 0
    %1076 = vmatpush.bf16.msra.mxu0 0
    %1077 = vmatpush.bf16.msra.mxu0 0
    %1078 = vmatpush.bf16.msra.mxu0 %v250
    %1079 = vmatpush.bf16.msra.mxu0 %v249
    %1080 = vmatmul.bf16.gmra.mxu0 %v996
    %v1081 = vpop.f32.mrf.mxu0
    %v1082 = vadd.f32 %v222, %v1081
    %v1083 = vpop.f32.mrf.mxu0
    %1084 = vdwg.mxu0
    %v1085 = vadd.f32 %v1071, %v1082
    %v1086 = vxor.u32 %v1085, 2147483648
    %v1087 = vmul.f32 %v1086, 1.442695
    %v1088 = vpow.pop %v1087
    %v1089 = vadd.f32 %v1088, 1.0
    %v1090 = vrcp.pop %v1089
    %v1091 = vmul.f32 %v1089, %v1090
    %v1092 = vsub.f32 1.0, %v1091
    %v1093 = vmul.f32 %v1090, %v1092
    %v1094 = vadd.f32 %v1090, %v1093
    %vm1095 = vweird.f32 %v1089
    %vm1096 = vweird.f32 %v1090
    %vm1097 = vmor %vm1095, %vm1096
    %v1098 = vsel %vm1097, %v1090, %v1094
    %v1099 = vand.u32 2147483647, %v1089
    %vm1100 = vcmp.eq.f32.partialorder %v1099, 8.507059e+37
    %v1101 = vand.u32 %v1089, 2147483648
    %v1102 = vor.u32 1.1754944e-38, %v1101
    %v1103 = vsel %vm1100, %v1102, %v1098
    %v1104 = vmul.f32 1.0, %v1103
    %1106 = vrot.lane.b32.xlu0 %v1082, 64
    %v1107 = vpop.permute.xlu0 %1106
    %v1109 = vmul.f32 %v1104, %v1107
    %1111 = vrot.lane.b32.xlu0 %v1109, 64
    %v1112 = vpop.permute.xlu0 %1111
    %v1114 = vadd.f32 %v1071, %v1112
    %v1115 = vtanh.pop %v1114
    %v1116 = vsub.f32 1.0, %v1104
    %1118 = vrot.lane.b32.xlu0 %v1115, 96
    %v1119 = vpop.permute.xlu0 %1118
    %v1121 = vmul.f32 %v1116, %v1119
    %v1122 = vmul.f32 %v1104, %v990
    %v1123 = vadd.f32 %v1121, %v1122
    %v1124 = vpack.c.bf16 %v1123, %v1123
    %1126 = vrot.lane.b32.xlu0 %v1124, 96
    %v1127 = vpop.permute.xlu0 %1126
    %v1129 = vsel %vm253, %v1127, 0
    %1131 = vmatpush.bf16.msra.mxu0 0
    %1132 = vmatpush.bf16.msra.mxu0 0
    %1133 = vmatpush.bf16.msra.mxu0 0
    %1134 = vmatpush.bf16.msra.mxu0 0
    %1135 = vmatpush.bf16.msra.mxu0 0
    %1136 = vmatpush.bf16.msra.mxu0 0
    %1137 = vmatpush.bf16.msra.mxu0 %v322
    %1138 = vmatpush.bf16.msra.mxu0 %v321
    %1139 = vmatmul.bf16.gmra.mxu0 %v1129
    %v1140 = vpop.f32.mrf.mxu0
    %v1141 = vadd.f32 %v238, %v1140
    %v1142 = vpop.f32.mrf.mxu0
    %1143 = vdwg.mxu0
    %v1144 = vpack.c.bf16 %v1069, %v1069
    %1146 = vrot.lane.b32.xlu0 %v1144, 96
    %v1147 = vpop.permute.xlu0 %1146
    %v1149 = vsel %vm253, %v1147, 0
    %1151 = vmatpush.bf16.msra.mxu0 0
    %1152 = vmatpush.bf16.msra.mxu0 0
    %1153 = vmatpush.bf16.msra.mxu0 0
    %1154 = vmatpush.bf16.msra.mxu0 0
    %1155 = vmatpush.bf16.msra.mxu0 0
    %1156 = vmatpush.bf16.msra.mxu0 0
    %1157 = vmatpush.bf16.msra.mxu0 %v350
    %1158 = vmatpush.bf16.msra.mxu0 %v349
    %1159 = vmatmul.bf16.gmra.mxu0 %v1149
    %v1160 = vpop.f32.mrf.mxu0
    %v1161 = vadd.f32 %v230, %v1160
    %v1162 = vpop.f32.mrf.mxu0
    %1163 = vdwg.mxu0
    %v1164 = vadd.f32 %v1141, %v1161
    %v1165 = vxor.u32 %v1164, 2147483648
    %v1166 = vmul.f32 %v1165, 1.442695
    %v1167 = vpow.pop %v1166
    %v1168 = vadd.f32 %v1167, 1.0
    %v1169 = vrcp.pop %v1168
    %v1170 = vmul.f32 %v1168, %v1169
    %v1171 = vsub.f32 1.0, %v1170
    %v1172 = vmul.f32 %v1169, %v1171
    %v1173 = vadd.f32 %v1169, %v1172
    %vm1174 = vweird.f32 %v1168
    %vm1175 = vweird.f32 %v1169
    %vm1176 = vmor %vm1174, %vm1175
    %v1177 = vsel %vm1176, %v1169, %v1173
    %v1178 = vand.u32 2147483647, %v1168
    %vm1179 = vcmp.eq.f32.partialorder %v1178, 8.507059e+37
    %v1180 = vand.u32 %v1168, 2147483648
    %v1181 = vor.u32 1.1754944e-38, %v1180
    %v1182 = vsel %vm1179, %v1181, %v1177
    %v1183 = vmul.f32 1.0, %v1182
    %1185 = vrot.lane.b32.xlu0 %v1161, 64
    %v1186 = vpop.permute.xlu0 %1185
    %v1188 = vmul.f32 %v1183, %v1186
    %1190 = vrot.lane.b32.xlu0 %v1188, 64
    %v1191 = vpop.permute.xlu0 %1190
    %v1193 = vadd.f32 %v1141, %v1191
    %v1194 = vtanh.pop %v1193
    %v1195 = vsub.f32 1.0, %v1183
    %1197 = vrot.lane.b32.xlu0 %v1194, 96
    %v1198 = vpop.permute.xlu0 %1197
    %v1200 = vmul.f32 %v1195, %v1198
    %v1201 = vmul.f32 %v1183, %v1069
    %v1202 = vadd.f32 %v1200, %v1201
    %s1203 = scalar_lea.vmem [#allocation2], 56
    %v1204 = vld [vmem:[%s1203] sm:$0xff]
    %1205 = vmatpush.bf16.msra.mxu0 0
    %1206 = vmatpush.bf16.msra.mxu0 0
    %1207 = vmatpush.bf16.msra.mxu0 0
    %1208 = vmatpush.bf16.msra.mxu0 0
    %1209 = vmatpush.bf16.msra.mxu0 0
    %1210 = vmatpush.bf16.msra.mxu0 0
    %1211 = vmatpush.bf16.msra.mxu0 %v250
    %1212 = vmatpush.bf16.msra.mxu0 %v249
    %1213 = vmatmul.bf16.gmra.mxu0 %v1129
    %v1214 = vpop.f32.mrf.mxu0
    %v1215 = vadd.f32 %v222, %v1214
    %v1216 = vpop.f32.mrf.mxu0
    %1217 = vdwg.mxu0
    %v1218 = vadd.f32 %v1204, %v1215
    %v1219 = vxor.u32 %v1218, 2147483648
    %v1220 = vmul.f32 %v1219, 1.442695
    %v1221 = vpow.pop %v1220
    %v1222 = vadd.f32 %v1221, 1.0
    %v1223 = vrcp.pop %v1222
    %v1224 = vmul.f32 %v1222, %v1223
    %v1225 = vsub.f32 1.0, %v1224
    %v1226 = vmul.f32 %v1223, %v1225
    %v1227 = vadd.f32 %v1223, %v1226
    %vm1228 = vweird.f32 %v1222
    %vm1229 = vweird.f32 %v1223
    %vm1230 = vmor %vm1228, %vm1229
    %v1231 = vsel %vm1230, %v1223, %v1227
    %v1232 = vand.u32 2147483647, %v1222
    %vm1233 = vcmp.eq.f32.partialorder %v1232, 8.507059e+37
    %v1234 = vand.u32 %v1222, 2147483648
    %v1235 = vor.u32 1.1754944e-38, %v1234
    %v1236 = vsel %vm1233, %v1235, %v1231
    %v1237 = vmul.f32 1.0, %v1236
    %1239 = vrot.lane.b32.xlu0 %v1215, 64
    %v1240 = vpop.permute.xlu0 %1239
    %v1242 = vmul.f32 %v1237, %v1240
    %1244 = vrot.lane.b32.xlu0 %v1242, 64
    %v1245 = vpop.permute.xlu0 %1244
    %v1247 = vadd.f32 %v1204, %v1245
    %v1248 = vtanh.pop %v1247
    %v1249 = vsub.f32 1.0, %v1237
    %1251 = vrot.lane.b32.xlu0 %v1248, 96
    %v1252 = vpop.permute.xlu0 %1251
    %v1254 = vmul.f32 %v1249, %v1252
    %v1255 = vmul.f32 %v1237, %v1123
    %v1256 = vadd.f32 %v1254, %v1255
    %v1257 = vpack.c.bf16 %v1256, %v1256
    %1259 = vrot.lane.b32.xlu0 %v1257, 96
    %v1260 = vpop.permute.xlu0 %1259
    %v1262 = vsel %vm253, %v1260, 0
    %1264 = vmatpush.bf16.msra.mxu0 0
    %1265 = vmatpush.bf16.msra.mxu0 0
    %1266 = vmatpush.bf16.msra.mxu0 0
    %1267 = vmatpush.bf16.msra.mxu0 0
    %1268 = vmatpush.bf16.msra.mxu0 0
    %1269 = vmatpush.bf16.msra.mxu0 0
    %1270 = vmatpush.bf16.msra.mxu0 %v322
    %1271 = vmatpush.bf16.msra.mxu0 %v321
    %1272 = vmatmul.bf16.gmra.mxu0 %v1262
    %v1273 = vpop.f32.mrf.mxu0
    %v1274 = vadd.f32 %v238, %v1273
    %v1275 = vpop.f32.mrf.mxu0
    %1276 = vdwg.mxu0
    %v1277 = vpack.c.bf16 %v1202, %v1202
    %1279 = vrot.lane.b32.xlu0 %v1277, 96
    %v1280 = vpop.permute.xlu0 %1279
    %v1282 = vsel %vm253, %v1280, 0
    %1284 = vmatpush.bf16.msra.mxu0 0
    %1285 = vmatpush.bf16.msra.mxu0 0
    %1286 = vmatpush.bf16.msra.mxu0 0
    %1287 = vmatpush.bf16.msra.mxu0 0
    %1288 = vmatpush.bf16.msra.mxu0 0
    %1289 = vmatpush.bf16.msra.mxu0 0
    %1290 = vmatpush.bf16.msra.mxu0 %v350
    %1291 = vmatpush.bf16.msra.mxu0 %v349
    %1292 = vmatmul.bf16.gmra.mxu0 %v1282
    %v1293 = vpop.f32.mrf.mxu0
    %v1294 = vadd.f32 %v230, %v1293
    %v1295 = vpop.f32.mrf.mxu0
    %1296 = vdwg.mxu0
    %v1297 = vadd.f32 %v1274, %v1294
    %v1298 = vxor.u32 %v1297, 2147483648
    %v1299 = vmul.f32 %v1298, 1.442695
    %v1300 = vpow.pop %v1299
    %v1301 = vadd.f32 %v1300, 1.0
    %v1302 = vrcp.pop %v1301
    %v1303 = vmul.f32 %v1301, %v1302
    %v1304 = vsub.f32 1.0, %v1303
    %v1305 = vmul.f32 %v1302, %v1304
    %v1306 = vadd.f32 %v1302, %v1305
    %vm1307 = vweird.f32 %v1301
    %vm1308 = vweird.f32 %v1302
    %vm1309 = vmor %vm1307, %vm1308
    %v1310 = vsel %vm1309, %v1302, %v1306
    %v1311 = vand.u32 2147483647, %v1301
    %vm1312 = vcmp.eq.f32.partialorder %v1311, 8.507059e+37
    %v1313 = vand.u32 %v1301, 2147483648
    %v1314 = vor.u32 1.1754944e-38, %v1313
    %v1315 = vsel %vm1312, %v1314, %v1310
    %v1316 = vmul.f32 1.0, %v1315
    %1318 = vrot.lane.b32.xlu0 %v1294, 64
    %v1319 = vpop.permute.xlu0 %1318
    %v1321 = vmul.f32 %v1316, %v1319
    %1323 = vrot.lane.b32.xlu0 %v1321, 64
    %v1324 = vpop.permute.xlu0 %1323
    %v1326 = vadd.f32 %v1274, %v1324
    %v1327 = vtanh.pop %v1326
    %v1328 = vsub.f32 1.0, %v1316
    %1330 = vrot.lane.b32.xlu0 %v1327, 96
    %v1331 = vpop.permute.xlu0 %1330
    %v1333 = vmul.f32 %v1328, %v1331
    %v1334 = vmul.f32 %v1316, %v1202
    %v1335 = vadd.f32 %v1333, %v1334
    %v1336 = vmax.f32 %v1335, 0.0
    %v1337 = vpack.c.bf16 %v1336, %v1336
    %v1338 = vld [vmem:[%s9] sm:$0xf]
    %v1339 = vld [vmem:[%s9 + $0x4] sm:$0xf]
    %v1340 = vld [vmem:[%s9 + $0x8] sm:$0xf]
    %v1341 = vld [vmem:[%s9 + $0xc] sm:$0xf]
    %v1342 = vld [vmem:[%s10] sm:$0x1]
    %v1344 = vperm.slane %v1342, 0
    %1347 = vrot.lane.b32.xlu0 %v1337, 96
    %v1348 = vpop.permute.xlu0 %1347
    %v1353 = vunpack.c.l.b16 %v1338
    %v1354 = vunpack.c.l.b16 %v1339
    %v1355 = vunpack.c.l.b16 %v1340
    %v1356 = vunpack.c.l.b16 %v1341
    %v1357 = vpack.c.b16 %v1354, %v1353
    %v1358 = vpack.c.b16 %v1356, %v1355
    %v1362 = vsel %vm253, %v1348, 0
    %1364 = vmatpush.bf16.msra.mxu0 0
    %1365 = vmatpush.bf16.msra.mxu0 0
    %1366 = vmatpush.bf16.msra.mxu0 0
    %1367 = vmatpush.bf16.msra.mxu0 0
    %1368 = vmatpush.bf16.msra.mxu0 0
    %1369 = vmatpush.bf16.msra.mxu0 0
    %1370 = vmatpush.bf16.msra.mxu0 %v1358
    %1371 = vmatpush.bf16.msra.mxu0 %v1357
    %1372 = vmatmul.bf16.gmra.mxu0 %v1362
    %v1373 = vpop.f32.mrf.mxu0
    %v1374 = vadd.f32 %v1344, %v1373
    %v1375 = vpop.f32.mrf.mxu0
    %1376 = vdwg.mxu0
    %1377 = vst [vmem:[#allocation14] sm:$0xff] %v1374
    // Predicated region
    $region70: #{tpu_custom_call.1} parent=1 // pred_check
      _
    $region71: #{tpu_custom_call.1} parent=1 // pred_check_branch
      %1379 = sbr.rel (0) target = $region73
    $region72: #{tpu_custom_call.1} parent=1 // pred_region
      %1381 = vsyncadd [#allocation5], 0
      %s1383 = sshll.u32 [#allocation14], 4
      %s1384 = int_to_ptr.vmem [resolvable:$true] %s1383
      %s1385 = sshll.u32 %s11, 4
      %s1386 = int_to_ptr.hbm [resolvable:$true] %s1385
      %1388 = dma.vmem_to_hbm [thread:$0]  %s1384, 128, %s1386, [#allocation5]
    $region73: #{tpu_custom_call.1} parent=1 // pred_fallthru
      _
    // Predicated region
    $region74: #{tpu_custom_call.1} parent=1 // pred_check
      _
    $region75: #{tpu_custom_call.1} parent=1 // pred_check_branch
      %1390 = sbr.rel (0) target = $region77
    $region76: #{tpu_custom_call.1} parent=1 // pred_region
      %1392 = dma.done [#allocation5], 128
    $region77: #{tpu_custom_call.1} parent=1 // pred_fallthru
      _
    %1393 = vsyncpa [#allocation4], 1
    %1394 = vsyncpa [#allocation7], 1
    %1395 = vsyncpa [#allocation10], 1
    %1396 = vsyncpa [#allocation13], 1
    %1397 = vsyncpa [#allocation5], 1

</llo_original>
